<compile_context>
chip_gen: v7x
topology: tpu7x:2x2x1
jax: 0.10.0
libtpu: 0.0.40
codegen_flags: <defaults>
</compile_context>

<pallas_src>
import functools

import jax
import jax.numpy as jnp
from jax import lax
from jax.experimental import pallas as pl
from jax.experimental.pallas import tpu as pltpu


# ------------------------- fused multi-layer LSTM kernel -------------------------
def _fused_lstm_kernel(emb_ref, h0_ref, c0_ref, w_ref, b_ref,
                       hT_ref, cT_ref, seq_sc, *, seq_len, h_dim):
    l = pl.program_id(0)
    H = h_dim
    D = seq_sc.shape[-1]      # padded per-layer input width (>= H and >= E)

    # Layer 0 consumes the (padded) embedded tokens; later layers consume the
    # previous layer's hidden states already resident in the VMEM scratch.
    @pl.when(l == 0)
    def _():
        seq_sc[...] = emb_ref[...]

    W = w_ref[0]              # (D + H, 4H)  fused [W_ih; W_hh]
    b = b_ref[0]              # (1, 4H)      bias_ih + bias_hh, gate order i,f,g,o

    def step(t, carry):
        h, c = carry                                   # (Bp, H) each
        x_t = seq_sc[t]                                # (Bp, D)
        xh = jnp.concatenate([x_t, h], axis=-1)        # (Bp, D + H)
        # One lane-dense MXU op per timestep (replaces 8 skinny N=32 matmuls).
        g = jnp.dot(xh, W, preferred_element_type=jnp.float32) + b   # (Bp, 4H)
        i_g = jax.nn.sigmoid(g[:, 0 * H:1 * H])
        f_g = jax.nn.sigmoid(g[:, 1 * H:2 * H])
        g_g = jnp.tanh(g[:, 2 * H:3 * H])
        o_g = jax.nn.sigmoid(g[:, 3 * H:4 * H])
        c_new = f_g * c + i_g * g_g
        h_new = o_g * jnp.tanh(c_new)
        # Stash this layer's output as the next layer's input (full-row store;
        # any padded columns are ignored because the matching W rows are zero).
        if D == H:
            seq_sc[t] = h_new
        else:
            seq_sc[t] = jnp.concatenate(
                [h_new, jnp.zeros((h_new.shape[0], D - H), h_new.dtype)],
                axis=-1)
        return h_new, c_new

    hT, cT = lax.fori_loop(0, seq_len, step, (h0_ref[0], c0_ref[0]),
                           unroll=True)
    # Final states written exactly once per layer.
    hT_ref[0] = hT
    cT_ref[0] = cT


def lstm_encoder_states(emb_padded, h0_p, c0_p, w_fused, b_fused):
    S, Bp, D = emb_padded.shape
    L, _, H = h0_p.shape
    GH = 4 * H
    kernel = functools.partial(_fused_lstm_kernel, seq_len=S, h_dim=H)
    grid_spec = pltpu.PrefetchScalarGridSpec(
        num_scalar_prefetch=0,
        grid=(L,),
        in_specs=[
            pl.BlockSpec((S, Bp, D), lambda l: (0, 0, 0)),        # embedded seq
            pl.BlockSpec((1, Bp, H), lambda l: (l, 0, 0)),        # h0[l]
            pl.BlockSpec((1, Bp, H), lambda l: (l, 0, 0)),        # c0[l]
            pl.BlockSpec((1, D + H, GH), lambda l: (l, 0, 0)),    # fused W[l]
            pl.BlockSpec((1, 1, GH), lambda l: (l, 0, 0)),        # fused b[l]
        ],
        out_specs=[
            pl.BlockSpec((1, Bp, H), lambda l: (l, 0, 0)),        # h_t[l]
            pl.BlockSpec((1, Bp, H), lambda l: (l, 0, 0)),        # c_t[l]
        ],
        scratch_shapes=[pltpu.VMEM((S, Bp, D), jnp.float32)],     # inter-layer acts
    )
    return pl.pallas_call(
        kernel,
        out_shape=(jax.ShapeDtypeStruct((L, Bp, H), jnp.float32),
                   jax.ShapeDtypeStruct((L, Bp, H), jnp.float32)),
        grid_spec=grid_spec,
        compiler_params=pltpu.CompilerParams(
            # Layer axis MUST stay sequential: the VMEM scratch carries the
            # previous layer's activations.
            dimension_semantics=("arbitrary",)),
    )(emb_padded, h0_p, c0_p, w_fused, b_fused)


# ---------------------------------- forward -----------------------------------
@jax.jit
def seq2seq_encoder_forward(x_tokens, h0, c0, params):
    S, B = x_tokens.shape
    L, _, H = h0.shape
    # Embedding lookup (glue: simple gather in plain JAX).
    emb = jnp.take(params["emb"], x_tokens, axis=0)             # (S, B, E)
    E = emb.shape[-1]
    D = params["w_fused"].shape[1] - H                          # padded input width
    Bp = ((B + 7) // 8) * 8                                     # sublane padding

    emb_p = jnp.pad(emb, ((0, 0), (0, Bp - B), (0, D - E)))
    h0_p = jnp.pad(h0, ((0, 0), (0, Bp - B), (0, 0)))
    c0_p = jnp.pad(c0, ((0, 0), (0, Bp - B), (0, 0)))

    hT, cT = lstm_encoder_states(emb_p, h0_p, c0_p,
                                 params["w_fused"], params["b_fused"])
    return hT[:, :B, :], cT[:, :B, :]


# ------------------------------- parameter init --------------------------------
def build_params(key, vocab_size, embedding_dim, num_layers, h_dim):
    """Builds fused-gate LSTM weights (PyTorch gate order i,f,g,o)."""
    D = max(embedding_dim, h_dim)
    keys = jax.random.split(key, 1 + 3 * num_layers)
    emb = 0.1 * jax.random.normal(keys[0], (vocab_size, embedding_dim),
                                  jnp.float32)
    w_list, b_list = [], []
    for l in range(num_layers):
        in_dim = embedding_dim if l == 0 else h_dim
        kih, khh, kb = keys[1 + 3 * l: 4 + 3 * l]
        # Pre-transposed so the kernel does x @ W; gates concatenated along N.
        w_ih = 0.1 * jax.random.normal(kih, (in_dim, 4 * h_dim), jnp.float32)
        w_hh = 0.1 * jax.random.normal(khh, (h_dim, 4 * h_dim), jnp.float32)
        # bias_ih + bias_hh folded into one (1, 4H) bias.
        b = 0.1 * jax.random.normal(kb, (1, 4 * h_dim), jnp.float32)
        w_ih_pad = jnp.zeros((D, 4 * h_dim), jnp.float32).at[:in_dim].set(w_ih)
        w_list.append(jnp.concatenate([w_ih_pad, w_hh], axis=0))   # (D+H, 4H)
        b_list.append(b[None])                                     # (1, 1, 4H)
    return {
        "emb": emb,
        "w_fused": jnp.stack(w_list, axis=0),        # (L, D + H, 4H)
        "b_fused": jnp.concatenate(b_list, axis=0),  # (L, 1, 4H)
    }


# ----------------------------- pure-JAX reference ------------------------------
def ref_forward(x_tokens, h0, c0, params):
    L, B, H = h0.shape
    emb = jnp.take(params["emb"], x_tokens, axis=0)
    E = emb.shape[-1]
    D = params["w_fused"].shape[1] - H
    inp = jnp.pad(emb, ((0, 0), (0, 0), (0, D - E)))
    h_fin, c_fin = [], []
    for l in range(L):
        W = params["w_fused"][l]
        b = params["b_fused"][l]

        def step(carry, x_t):
            h, c = carry
            g = jnp.dot(jnp.concatenate([x_t, h], axis=-1), W,
                        precision=lax.Precision.HIGHEST) + b
            i_g = jax.nn.sigmoid(g[:, 0 * H:1 * H])
            f_g = jax.nn.sigmoid(g[:, 1 * H:2 * H])
            g_g = jnp.tanh(g[:, 2 * H:3 * H])
            o_g = jax.nn.sigmoid(g[:, 3 * H:4 * H])
            c_new = f_g * c + i_g * g_g
            h_new = o_g * jnp.tanh(c_new)
            return (h_new, c_new), h_new

        (hT, cT), out_seq = lax.scan(step, (h0[l], c0[l]), inp)
        inp = jnp.pad(out_seq, ((0, 0), (0, 0), (0, D - H)))
        h_fin.append(hT)
        c_fin.append(cT)
    return jnp.stack(h_fin, 0), jnp.stack(c_fin, 0)


# ------------------------------------ main --------------------------------------
if __name__ == "__main__":
    vocab_size, embedding_dim, num_layers, h_dim = 32, 16, 2, 32
    S, B = 8, 2

    root = jax.random.PRNGKey(0)
    k_params, k_x, k_h, k_c = jax.random.split(root, 4)

    params = build_params(k_params, vocab_size, embedding_dim, num_layers, h_dim)

    x_tokens = jax.random.randint(k_x, (S, B), 0, vocab_size, jnp.int32)
    h0 = 0.1 * jax.random.normal(k_h, (num_layers, B, h_dim), jnp.float32)
    c0 = 0.1 * jax.random.normal(k_c, (num_layers, B, h_dim), jnp.float32)

    h_t, c_t = seq2seq_encoder_forward(x_tokens, h0, c0, params)
    jax.block_until_ready((h_t, c_t))

    ref_h, ref_c = ref_forward(x_tokens, h0, c0, params)
    assert h_t.shape == (num_layers, B, h_dim)
    assert c_t.shape == (num_layers, B, h_dim)
    assert jnp.allclose(h_t, ref_h, atol=1e-5, rtol=1e-5)
    assert jnp.allclose(c_t, ref_c, atol=1e-5, rtol=1e-5)

    print("KERNEL_OK")
</pallas_src>

<mosaic_0001>
module attributes {stable_mosaic.version = 11 : i64} {
  func.func @_fused_lstm_kernel(%arg0: i32, %arg1: memref<8x8x32xf32, #tpu.memory_space<vmem>>, %arg2: memref<1x8x32xf32, #tpu.memory_space<vmem>>, %arg3: memref<1x8x32xf32, #tpu.memory_space<vmem>>, %arg4: memref<1x64x128xf32, #tpu.memory_space<vmem>>, %arg5: memref<1x1x128xf32, #tpu.memory_space<vmem>>, %arg6: memref<1x8x32xf32, #tpu.memory_space<vmem>>, %arg7: memref<1x8x32xf32, #tpu.memory_space<vmem>>, %arg8: memref<8x8x32xf32, #tpu.memory_space<vmem>>) attributes {dimension_semantics = [#tpu.dimension_semantics<arbitrary>], iteration_bounds = array<i64: 2>, scalar_prefetch = 0 : i64, scratch_operands = 1 : i64, tpu.core_type = #tpu.core_type<tc>, window_params = [{pipeline_mode = #tpu.pipeline_mode<synchronous>, transform_indices = @transform_0, window_bounds = array<i64: 8, 8, 32>}, {transform_indices = @transform_1, window_bounds = array<i64: 1, 8, 32>}, {transform_indices = @transform_2, window_bounds = array<i64: 1, 8, 32>}, {transform_indices = @transform_3, window_bounds = array<i64: 1, 64, 128>}, {transform_indices = @transform_4, window_bounds = array<i64: 1, 1, 128>}, {transform_indices = @transform_5, window_bounds = array<i64: 1, 8, 32>}, {transform_indices = @transform_6, window_bounds = array<i64: 1, 8, 32>}]} {
    %c0_i32 = arith.constant 0 : i32
    %0 = arith.cmpi eq, %arg0, %c0_i32 : i32
    %1 = arith.extui %0 : i1 to i32
    %c0_i32_0 = arith.constant 0 : i32
    %2 = arith.cmpi ne, %1, %c0_i32_0 : i32
    scf.if %2 {
      %c0_82 = arith.constant 0 : index
      %c0_83 = arith.constant 0 : index
      %c0_84 = arith.constant 0 : index
      %305 = vector.load %arg1[%c0_82, %c0_83, %c0_84] : memref<8x8x32xf32, #tpu.memory_space<vmem>>, vector<8x8x32xf32>
      %c0_85 = arith.constant 0 : index
      %c0_86 = arith.constant 0 : index
      %c0_87 = arith.constant 0 : index
      %306 = vector.load %arg8[%c0_85, %c0_86, %c0_87] : memref<8x8x32xf32, #tpu.memory_space<vmem>>, vector<8x8x32xf32>
      tpu.vector_store %arg8[%c0_85, %c0_86, %c0_87], %305 {strides = array<i32>} : memref<8x8x32xf32, #tpu.memory_space<vmem>>, vector<8x8x32xf32>,
    } else {
    }
    %c0 = arith.constant 0 : index
    %c0_1 = arith.constant 0 : index
    %c0_2 = arith.constant 0 : index
    %3 = vector.load %arg4[%c0, %c0_1, %c0_2] : memref<1x64x128xf32, #tpu.memory_space<vmem>>, vector<1x64x128xf32>
    %4 = vector.shape_cast %3 : vector<1x64x128xf32> to vector<64x128xf32>
    %c0_3 = arith.constant 0 : index
    %c0_4 = arith.constant 0 : index
    %c0_5 = arith.constant 0 : index
    %5 = vector.load %arg5[%c0_3, %c0_4, %c0_5] : memref<1x1x128xf32, #tpu.memory_space<vmem>>, vector<1x1x128xf32>
    %6 = vector.shape_cast %5 : vector<1x1x128xf32> to vector<1x128xf32>
    %c0_6 = arith.constant 0 : index
    %c0_7 = arith.constant 0 : index
    %c0_8 = arith.constant 0 : index
    %7 = vector.load %arg2[%c0_6, %c0_7, %c0_8] : memref<1x8x32xf32, #tpu.memory_space<vmem>>, vector<1x8x32xf32>
    %8 = vector.shape_cast %7 : vector<1x8x32xf32> to vector<8x32xf32>
    %c0_9 = arith.constant 0 : index
    %c0_10 = arith.constant 0 : index
    %c0_11 = arith.constant 0 : index
    %9 = vector.load %arg3[%c0_9, %c0_10, %c0_11] : memref<1x8x32xf32, #tpu.memory_space<vmem>>, vector<1x8x32xf32>
    %10 = vector.shape_cast %9 : vector<1x8x32xf32> to vector<8x32xf32>
    %c0_i32_12 = arith.constant 0 : i32
    %11 = arith.index_cast %c0_i32_12 : i32 to index
    %c0_13 = arith.constant 0 : index
    %c0_14 = arith.constant 0 : index
    %12 = vector.load %arg8[%11, %c0_13, %c0_14] : memref<8x8x32xf32, #tpu.memory_space<vmem>>, vector<1x8x32xf32>
    %13 = vector.shape_cast %12 : vector<1x8x32xf32> to vector<8x32xf32>
    %14 = tpu.concatenate %13, %8 in 1 : vector<8x32xf32>, vector<8x32xf32> -> vector<8x64xf32>
    %cst = arith.constant dense<0.000000e+00> : vector<8x128xf32>
    %15 = tpu.matmul %14, %4, %cst {dimension_numbers = #tpu.dot_dimension_numbers<[1], [0], [0], [1], [0, 0, 1, 1], [], []>} : vector<8x64xf32>, vector<64x128xf32>, vector<8x128xf32> -> vector<8x128xf32>
    %16 = vector.broadcast %6 : vector<1x128xf32> to vector<8x128xf32>
    %17 = arith.addf %15, %16 : vector<8x128xf32>
    %18 = vector.extract_strided_slice %17 {offsets = [0, 0], sizes = [8, 32], strides = [1, 1]} : vector<8x128xf32> to vector<8x32xf32>
    %19 = arith.negf %18 : vector<8x32xf32>
    %20 = math.exp %19 : vector<8x32xf32>
    %cst_15 = arith.constant 1.000000e+00 : f32
    %21 = vector.broadcast %cst_15 : f32 to vector<8x32xf32>
    %22 = arith.addf %21, %20 : vector<8x32xf32>
    %23 = arith.divf %21, %22 : vector<8x32xf32>
    %24 = vector.extract_strided_slice %17 {offsets = [0, 32], sizes = [8, 32], strides = [1, 1]} : vector<8x128xf32> to vector<8x32xf32>
    %25 = arith.negf %24 : vector<8x32xf32>
    %26 = math.exp %25 : vector<8x32xf32>
    %cst_16 = arith.constant 1.000000e+00 : f32
    %27 = vector.broadcast %cst_16 : f32 to vector<8x32xf32>
    %28 = arith.addf %27, %26 : vector<8x32xf32>
    %29 = arith.divf %27, %28 : vector<8x32xf32>
    %30 = vector.extract_strided_slice %17 {offsets = [0, 64], sizes = [8, 32], strides = [1, 1]} : vector<8x128xf32> to vector<8x32xf32>
    %31 = math.tanh %30 : vector<8x32xf32>
    %32 = vector.extract_strided_slice %17 {offsets = [0, 96], sizes = [8, 32], strides = [1, 1]} : vector<8x128xf32> to vector<8x32xf32>
    %33 = arith.negf %32 : vector<8x32xf32>
    %34 = math.exp %33 : vector<8x32xf32>
    %cst_17 = arith.constant 1.000000e+00 : f32
    %35 = vector.broadcast %cst_17 : f32 to vector<8x32xf32>
    %36 = arith.addf %35, %34 : vector<8x32xf32>
    %37 = arith.divf %35, %36 : vector<8x32xf32>
    %38 = arith.mulf %29, %10 : vector<8x32xf32>
    %39 = arith.mulf %23, %31 : vector<8x32xf32>
    %40 = arith.addf %38, %39 : vector<8x32xf32>
    %41 = math.tanh %40 : vector<8x32xf32>
    %42 = arith.mulf %37, %41 : vector<8x32xf32>
    %43 = arith.index_cast %c0_i32_12 : i32 to index
    %c0_18 = arith.constant 0 : index
    %c0_19 = arith.constant 0 : index
    %44 = vector.load %arg8[%43, %c0_18, %c0_19] : memref<8x8x32xf32, #tpu.memory_space<vmem>>, vector<1x8x32xf32>
    %45 = vector.shape_cast %44 : vector<1x8x32xf32> to vector<8x32xf32>
    %46 = vector.shape_cast %42 : vector<8x32xf32> to vector<1x8x32xf32>
    tpu.vector_store %arg8[%43, %c0_18, %c0_19], %46 {strides = array<i32>} : memref<8x8x32xf32, #tpu.memory_space<vmem>>, vector<1x8x32xf32>,
    %c1_i32 = arith.constant 1 : i32
    %47 = arith.index_cast %c1_i32 : i32 to index
    %c0_20 = arith.constant 0 : index
    %c0_21 = arith.constant 0 : index
    %48 = vector.load %arg8[%47, %c0_20, %c0_21] : memref<8x8x32xf32, #tpu.memory_space<vmem>>, vector<1x8x32xf32>
    %49 = vector.shape_cast %48 : vector<1x8x32xf32> to vector<8x32xf32>
    %50 = tpu.concatenate %49, %42 in 1 : vector<8x32xf32>, vector<8x32xf32> -> vector<8x64xf32>
    %cst_22 = arith.constant dense<0.000000e+00> : vector<8x128xf32>
    %51 = tpu.matmul %50, %4, %cst_22 {dimension_numbers = #tpu.dot_dimension_numbers<[1], [0], [0], [1], [0, 0, 1, 1], [], []>} : vector<8x64xf32>, vector<64x128xf32>, vector<8x128xf32> -> vector<8x128xf32>
    %52 = vector.broadcast %6 : vector<1x128xf32> to vector<8x128xf32>
    %53 = arith.addf %51, %52 : vector<8x128xf32>
    %54 = vector.extract_strided_slice %53 {offsets = [0, 0], sizes = [8, 32], strides = [1, 1]} : vector<8x128xf32> to vector<8x32xf32>
    %55 = arith.negf %54 : vector<8x32xf32>
    %56 = math.exp %55 : vector<8x32xf32>
    %cst_23 = arith.constant 1.000000e+00 : f32
    %57 = vector.broadcast %cst_23 : f32 to vector<8x32xf32>
    %58 = arith.addf %57, %56 : vector<8x32xf32>
    %59 = arith.divf %57, %58 : vector<8x32xf32>
    %60 = vector.extract_strided_slice %53 {offsets = [0, 32], sizes = [8, 32], strides = [1, 1]} : vector<8x128xf32> to vector<8x32xf32>
    %61 = arith.negf %60 : vector<8x32xf32>
    %62 = math.exp %61 : vector<8x32xf32>
    %cst_24 = arith.constant 1.000000e+00 : f32
    %63 = vector.broadcast %cst_24 : f32 to vector<8x32xf32>
    %64 = arith.addf %63, %62 : vector<8x32xf32>
    %65 = arith.divf %63, %64 : vector<8x32xf32>
    %66 = vector.extract_strided_slice %53 {offsets = [0, 64], sizes = [8, 32], strides = [1, 1]} : vector<8x128xf32> to vector<8x32xf32>
    %67 = math.tanh %66 : vector<8x32xf32>
    %68 = vector.extract_strided_slice %53 {offsets = [0, 96], sizes = [8, 32], strides = [1, 1]} : vector<8x128xf32> to vector<8x32xf32>
    %69 = arith.negf %68 : vector<8x32xf32>
    %70 = math.exp %69 : vector<8x32xf32>
    %cst_25 = arith.constant 1.000000e+00 : f32
    %71 = vector.broadcast %cst_25 : f32 to vector<8x32xf32>
    %72 = arith.addf %71, %70 : vector<8x32xf32>
    %73 = arith.divf %71, %72 : vector<8x32xf32>
    %74 = arith.mulf %65, %40 : vector<8x32xf32>
    %75 = arith.mulf %59, %67 : vector<8x32xf32>
    %76 = arith.addf %74, %75 : vector<8x32xf32>
    %77 = math.tanh %76 : vector<8x32xf32>
    %78 = arith.mulf %73, %77 : vector<8x32xf32>
    %79 = arith.index_cast %c1_i32 : i32 to index
    %c0_26 = arith.constant 0 : index
    %c0_27 = arith.constant 0 : index
    %80 = vector.load %arg8[%79, %c0_26, %c0_27] : memref<8x8x32xf32, #tpu.memory_space<vmem>>, vector<1x8x32xf32>
    %81 = vector.shape_cast %80 : vector<1x8x32xf32> to vector<8x32xf32>
    %82 = vector.shape_cast %78 : vector<8x32xf32> to vector<1x8x32xf32>
    tpu.vector_store %arg8[%79, %c0_26, %c0_27], %82 {strides = array<i32>} : memref<8x8x32xf32, #tpu.memory_space<vmem>>, vector<1x8x32xf32>,
    %c2_i32 = arith.constant 2 : i32
    %83 = arith.index_cast %c2_i32 : i32 to index
    %c0_28 = arith.constant 0 : index
    %c0_29 = arith.constant 0 : index
    %84 = vector.load %arg8[%83, %c0_28, %c0_29] : memref<8x8x32xf32, #tpu.memory_space<vmem>>, vector<1x8x32xf32>
    %85 = vector.shape_cast %84 : vector<1x8x32xf32> to vector<8x32xf32>
    %86 = tpu.concatenate %85, %78 in 1 : vector<8x32xf32>, vector<8x32xf32> -> vector<8x64xf32>
    %cst_30 = arith.constant dense<0.000000e+00> : vector<8x128xf32>
    %87 = tpu.matmul %86, %4, %cst_30 {dimension_numbers = #tpu.dot_dimension_numbers<[1], [0], [0], [1], [0, 0, 1, 1], [], []>} : vector<8x64xf32>, vector<64x128xf32>, vector<8x128xf32> -> vector<8x128xf32>
    %88 = vector.broadcast %6 : vector<1x128xf32> to vector<8x128xf32>
    %89 = arith.addf %87, %88 : vector<8x128xf32>
    %90 = vector.extract_strided_slice %89 {offsets = [0, 0], sizes = [8, 32], strides = [1, 1]} : vector<8x128xf32> to vector<8x32xf32>
    %91 = arith.negf %90 : vector<8x32xf32>
    %92 = math.exp %91 : vector<8x32xf32>
    %cst_31 = arith.constant 1.000000e+00 : f32
    %93 = vector.broadcast %cst_31 : f32 to vector<8x32xf32>
    %94 = arith.addf %93, %92 : vector<8x32xf32>
    %95 = arith.divf %93, %94 : vector<8x32xf32>
    %96 = vector.extract_strided_slice %89 {offsets = [0, 32], sizes = [8, 32], strides = [1, 1]} : vector<8x128xf32> to vector<8x32xf32>
    %97 = arith.negf %96 : vector<8x32xf32>
    %98 = math.exp %97 : vector<8x32xf32>
    %cst_32 = arith.constant 1.000000e+00 : f32
    %99 = vector.broadcast %cst_32 : f32 to vector<8x32xf32>
    %100 = arith.addf %99, %98 : vector<8x32xf32>
    %101 = arith.divf %99, %100 : vector<8x32xf32>
    %102 = vector.extract_strided_slice %89 {offsets = [0, 64], sizes = [8, 32], strides = [1, 1]} : vector<8x128xf32> to vector<8x32xf32>
    %103 = math.tanh %102 : vector<8x32xf32>
    %104 = vector.extract_strided_slice %89 {offsets = [0, 96], sizes = [8, 32], strides = [1, 1]} : vector<8x128xf32> to vector<8x32xf32>
    %105 = arith.negf %104 : vector<8x32xf32>
    %106 = math.exp %105 : vector<8x32xf32>
    %cst_33 = arith.constant 1.000000e+00 : f32
    %107 = vector.broadcast %cst_33 : f32 to vector<8x32xf32>
    %108 = arith.addf %107, %106 : vector<8x32xf32>
    %109 = arith.divf %107, %108 : vector<8x32xf32>
    %110 = arith.mulf %101, %76 : vector<8x32xf32>
    %111 = arith.mulf %95, %103 : vector<8x32xf32>
    %112 = arith.addf %110, %111 : vector<8x32xf32>
    %113 = math.tanh %112 : vector<8x32xf32>
    %114 = arith.mulf %109, %113 : vector<8x32xf32>
    %115 = arith.index_cast %c2_i32 : i32 to index
    %c0_34 = arith.constant 0 : index
    %c0_35 = arith.constant 0 : index
    %116 = vector.load %arg8[%115, %c0_34, %c0_35] : memref<8x8x32xf32, #tpu.memory_space<vmem>>, vector<1x8x32xf32>
    %117 = vector.shape_cast %116 : vector<1x8x32xf32> to vector<8x32xf32>
    %118 = vector.shape_cast %114 : vector<8x32xf32> to vector<1x8x32xf32>
    tpu.vector_store %arg8[%115, %c0_34, %c0_35], %118 {strides = array<i32>} : memref<8x8x32xf32, #tpu.memory_space<vmem>>, vector<1x8x32xf32>,
    %c3_i32 = arith.constant 3 : i32
    %119 = arith.index_cast %c3_i32 : i32 to index
    %c0_36 = arith.constant 0 : index
    %c0_37 = arith.constant 0 : index
    %120 = vector.load %arg8[%119, %c0_36, %c0_37] : memref<8x8x32xf32, #tpu.memory_space<vmem>>, vector<1x8x32xf32>
    %121 = vector.shape_cast %120 : vector<1x8x32xf32> to vector<8x32xf32>
    %122 = tpu.concatenate %121, %114 in 1 : vector<8x32xf32>, vector<8x32xf32> -> vector<8x64xf32>
    %cst_38 = arith.constant dense<0.000000e+00> : vector<8x128xf32>
    %123 = tpu.matmul %122, %4, %cst_38 {dimension_numbers = #tpu.dot_dimension_numbers<[1], [0], [0], [1], [0, 0, 1, 1], [], []>} : vector<8x64xf32>, vector<64x128xf32>, vector<8x128xf32> -> vector<8x128xf32>
    %124 = vector.broadcast %6 : vector<1x128xf32> to vector<8x128xf32>
    %125 = arith.addf %123, %124 : vector<8x128xf32>
    %126 = vector.extract_strided_slice %125 {offsets = [0, 0], sizes = [8, 32], strides = [1, 1]} : vector<8x128xf32> to vector<8x32xf32>
    %127 = arith.negf %126 : vector<8x32xf32>
    %128 = math.exp %127 : vector<8x32xf32>
    %cst_39 = arith.constant 1.000000e+00 : f32
    %129 = vector.broadcast %cst_39 : f32 to vector<8x32xf32>
    %130 = arith.addf %129, %128 : vector<8x32xf32>
    %131 = arith.divf %129, %130 : vector<8x32xf32>
    %132 = vector.extract_strided_slice %125 {offsets = [0, 32], sizes = [8, 32], strides = [1, 1]} : vector<8x128xf32> to vector<8x32xf32>
    %133 = arith.negf %132 : vector<8x32xf32>
    %134 = math.exp %133 : vector<8x32xf32>
    %cst_40 = arith.constant 1.000000e+00 : f32
    %135 = vector.broadcast %cst_40 : f32 to vector<8x32xf32>
    %136 = arith.addf %135, %134 : vector<8x32xf32>
    %137 = arith.divf %135, %136 : vector<8x32xf32>
    %138 = vector.extract_strided_slice %125 {offsets = [0, 64], sizes = [8, 32], strides = [1, 1]} : vector<8x128xf32> to vector<8x32xf32>
    %139 = math.tanh %138 : vector<8x32xf32>
    %140 = vector.extract_strided_slice %125 {offsets = [0, 96], sizes = [8, 32], strides = [1, 1]} : vector<8x128xf32> to vector<8x32xf32>
    %141 = arith.negf %140 : vector<8x32xf32>
    %142 = math.exp %141 : vector<8x32xf32>
    %cst_41 = arith.constant 1.000000e+00 : f32
    %143 = vector.broadcast %cst_41 : f32 to vector<8x32xf32>
    %144 = arith.addf %143, %142 : vector<8x32xf32>
    %145 = arith.divf %143, %144 : vector<8x32xf32>
    %146 = arith.mulf %137, %112 : vector<8x32xf32>
    %147 = arith.mulf %131, %139 : vector<8x32xf32>
    %148 = arith.addf %146, %147 : vector<8x32xf32>
    %149 = math.tanh %148 : vector<8x32xf32>
    %150 = arith.mulf %145, %149 : vector<8x32xf32>
    %151 = arith.index_cast %c3_i32 : i32 to index
    %c0_42 = arith.constant 0 : index
    %c0_43 = arith.constant 0 : index
    %152 = vector.load %arg8[%151, %c0_42, %c0_43] : memref<8x8x32xf32, #tpu.memory_space<vmem>>, vector<1x8x32xf32>
    %153 = vector.shape_cast %152 : vector<1x8x32xf32> to vector<8x32xf32>
    %154 = vector.shape_cast %150 : vector<8x32xf32> to vector<1x8x32xf32>
    tpu.vector_store %arg8[%151, %c0_42, %c0_43], %154 {strides = array<i32>} : memref<8x8x32xf32, #tpu.memory_space<vmem>>, vector<1x8x32xf32>,
    %c4_i32 = arith.constant 4 : i32
    %155 = arith.index_cast %c4_i32 : i32 to index
    %c0_44 = arith.constant 0 : index
    %c0_45 = arith.constant 0 : index
    %156 = vector.load %arg8[%155, %c0_44, %c0_45] : memref<8x8x32xf32, #tpu.memory_space<vmem>>, vector<1x8x32xf32>
    %157 = vector.shape_cast %156 : vector<1x8x32xf32> to vector<8x32xf32>
    %158 = tpu.concatenate %157, %150 in 1 : vector<8x32xf32>, vector<8x32xf32> -> vector<8x64xf32>
    %cst_46 = arith.constant dense<0.000000e+00> : vector<8x128xf32>
    %159 = tpu.matmul %158, %4, %cst_46 {dimension_numbers = #tpu.dot_dimension_numbers<[1], [0], [0], [1], [0, 0, 1, 1], [], []>} : vector<8x64xf32>, vector<64x128xf32>, vector<8x128xf32> -> vector<8x128xf32>
    %160 = vector.broadcast %6 : vector<1x128xf32> to vector<8x128xf32>
    %161 = arith.addf %159, %160 : vector<8x128xf32>
    %162 = vector.extract_strided_slice %161 {offsets = [0, 0], sizes = [8, 32], strides = [1, 1]} : vector<8x128xf32> to vector<8x32xf32>
    %163 = arith.negf %162 : vector<8x32xf32>
    %164 = math.exp %163 : vector<8x32xf32>
    %cst_47 = arith.constant 1.000000e+00 : f32
    %165 = vector.broadcast %cst_47 : f32 to vector<8x32xf32>
    %166 = arith.addf %165, %164 : vector<8x32xf32>
    %167 = arith.divf %165, %166 : vector<8x32xf32>
    %168 = vector.extract_strided_slice %161 {offsets = [0, 32], sizes = [8, 32], strides = [1, 1]} : vector<8x128xf32> to vector<8x32xf32>
    %169 = arith.negf %168 : vector<8x32xf32>
    %170 = math.exp %169 : vector<8x32xf32>
    %cst_48 = arith.constant 1.000000e+00 : f32
    %171 = vector.broadcast %cst_48 : f32 to vector<8x32xf32>
    %172 = arith.addf %171, %170 : vector<8x32xf32>
    %173 = arith.divf %171, %172 : vector<8x32xf32>
    %174 = vector.extract_strided_slice %161 {offsets = [0, 64], sizes = [8, 32], strides = [1, 1]} : vector<8x128xf32> to vector<8x32xf32>
    %175 = math.tanh %174 : vector<8x32xf32>
    %176 = vector.extract_strided_slice %161 {offsets = [0, 96], sizes = [8, 32], strides = [1, 1]} : vector<8x128xf32> to vector<8x32xf32>
    %177 = arith.negf %176 : vector<8x32xf32>
    %178 = math.exp %177 : vector<8x32xf32>
    %cst_49 = arith.constant 1.000000e+00 : f32
    %179 = vector.broadcast %cst_49 : f32 to vector<8x32xf32>
    %180 = arith.addf %179, %178 : vector<8x32xf32>
    %181 = arith.divf %179, %180 : vector<8x32xf32>
    %182 = arith.mulf %173, %148 : vector<8x32xf32>
    %183 = arith.mulf %167, %175 : vector<8x32xf32>
    %184 = arith.addf %182, %183 : vector<8x32xf32>
    %185 = math.tanh %184 : vector<8x32xf32>
    %186 = arith.mulf %181, %185 : vector<8x32xf32>
    %187 = arith.index_cast %c4_i32 : i32 to index
    %c0_50 = arith.constant 0 : index
    %c0_51 = arith.constant 0 : index
    %188 = vector.load %arg8[%187, %c0_50, %c0_51] : memref<8x8x32xf32, #tpu.memory_space<vmem>>, vector<1x8x32xf32>
    %189 = vector.shape_cast %188 : vector<1x8x32xf32> to vector<8x32xf32>
    %190 = vector.shape_cast %186 : vector<8x32xf32> to vector<1x8x32xf32>
    tpu.vector_store %arg8[%187, %c0_50, %c0_51], %190 {strides = array<i32>} : memref<8x8x32xf32, #tpu.memory_space<vmem>>, vector<1x8x32xf32>,
    %c5_i32 = arith.constant 5 : i32
    %191 = arith.index_cast %c5_i32 : i32 to index
    %c0_52 = arith.constant 0 : index
    %c0_53 = arith.constant 0 : index
    %192 = vector.load %arg8[%191, %c0_52, %c0_53] : memref<8x8x32xf32, #tpu.memory_space<vmem>>, vector<1x8x32xf32>
    %193 = vector.shape_cast %192 : vector<1x8x32xf32> to vector<8x32xf32>
    %194 = tpu.concatenate %193, %186 in 1 : vector<8x32xf32>, vector<8x32xf32> -> vector<8x64xf32>
    %cst_54 = arith.constant dense<0.000000e+00> : vector<8x128xf32>
    %195 = tpu.matmul %194, %4, %cst_54 {dimension_numbers = #tpu.dot_dimension_numbers<[1], [0], [0], [1], [0, 0, 1, 1], [], []>} : vector<8x64xf32>, vector<64x128xf32>, vector<8x128xf32> -> vector<8x128xf32>
    %196 = vector.broadcast %6 : vector<1x128xf32> to vector<8x128xf32>
    %197 = arith.addf %195, %196 : vector<8x128xf32>
    %198 = vector.extract_strided_slice %197 {offsets = [0, 0], sizes = [8, 32], strides = [1, 1]} : vector<8x128xf32> to vector<8x32xf32>
    %199 = arith.negf %198 : vector<8x32xf32>
    %200 = math.exp %199 : vector<8x32xf32>
    %cst_55 = arith.constant 1.000000e+00 : f32
    %201 = vector.broadcast %cst_55 : f32 to vector<8x32xf32>
    %202 = arith.addf %201, %200 : vector<8x32xf32>
    %203 = arith.divf %201, %202 : vector<8x32xf32>
    %204 = vector.extract_strided_slice %197 {offsets = [0, 32], sizes = [8, 32], strides = [1, 1]} : vector<8x128xf32> to vector<8x32xf32>
    %205 = arith.negf %204 : vector<8x32xf32>
    %206 = math.exp %205 : vector<8x32xf32>
    %cst_56 = arith.constant 1.000000e+00 : f32
    %207 = vector.broadcast %cst_56 : f32 to vector<8x32xf32>
    %208 = arith.addf %207, %206 : vector<8x32xf32>
    %209 = arith.divf %207, %208 : vector<8x32xf32>
    %210 = vector.extract_strided_slice %197 {offsets = [0, 64], sizes = [8, 32], strides = [1, 1]} : vector<8x128xf32> to vector<8x32xf32>
    %211 = math.tanh %210 : vector<8x32xf32>
    %212 = vector.extract_strided_slice %197 {offsets = [0, 96], sizes = [8, 32], strides = [1, 1]} : vector<8x128xf32> to vector<8x32xf32>
    %213 = arith.negf %212 : vector<8x32xf32>
    %214 = math.exp %213 : vector<8x32xf32>
    %cst_57 = arith.constant 1.000000e+00 : f32
    %215 = vector.broadcast %cst_57 : f32 to vector<8x32xf32>
    %216 = arith.addf %215, %214 : vector<8x32xf32>
    %217 = arith.divf %215, %216 : vector<8x32xf32>
    %218 = arith.mulf %209, %184 : vector<8x32xf32>
    %219 = arith.mulf %203, %211 : vector<8x32xf32>
    %220 = arith.addf %218, %219 : vector<8x32xf32>
    %221 = math.tanh %220 : vector<8x32xf32>
    %222 = arith.mulf %217, %221 : vector<8x32xf32>
    %223 = arith.index_cast %c5_i32 : i32 to index
    %c0_58 = arith.constant 0 : index
    %c0_59 = arith.constant 0 : index
    %224 = vector.load %arg8[%223, %c0_58, %c0_59] : memref<8x8x32xf32, #tpu.memory_space<vmem>>, vector<1x8x32xf32>
    %225 = vector.shape_cast %224 : vector<1x8x32xf32> to vector<8x32xf32>
    %226 = vector.shape_cast %222 : vector<8x32xf32> to vector<1x8x32xf32>
    tpu.vector_store %arg8[%223, %c0_58, %c0_59], %226 {strides = array<i32>} : memref<8x8x32xf32, #tpu.memory_space<vmem>>, vector<1x8x32xf32>,
    %c6_i32 = arith.constant 6 : i32
    %227 = arith.index_cast %c6_i32 : i32 to index
    %c0_60 = arith.constant 0 : index
    %c0_61 = arith.constant 0 : index
    %228 = vector.load %arg8[%227, %c0_60, %c0_61] : memref<8x8x32xf32, #tpu.memory_space<vmem>>, vector<1x8x32xf32>
    %229 = vector.shape_cast %228 : vector<1x8x32xf32> to vector<8x32xf32>
    %230 = tpu.concatenate %229, %222 in 1 : vector<8x32xf32>, vector<8x32xf32> -> vector<8x64xf32>
    %cst_62 = arith.constant dense<0.000000e+00> : vector<8x128xf32>
    %231 = tpu.matmul %230, %4, %cst_62 {dimension_numbers = #tpu.dot_dimension_numbers<[1], [0], [0], [1], [0, 0, 1, 1], [], []>} : vector<8x64xf32>, vector<64x128xf32>, vector<8x128xf32> -> vector<8x128xf32>
    %232 = vector.broadcast %6 : vector<1x128xf32> to vector<8x128xf32>
    %233 = arith.addf %231, %232 : vector<8x128xf32>
    %234 = vector.extract_strided_slice %233 {offsets = [0, 0], sizes = [8, 32], strides = [1, 1]} : vector<8x128xf32> to vector<8x32xf32>
    %235 = arith.negf %234 : vector<8x32xf32>
    %236 = math.exp %235 : vector<8x32xf32>
    %cst_63 = arith.constant 1.000000e+00 : f32
    %237 = vector.broadcast %cst_63 : f32 to vector<8x32xf32>
    %238 = arith.addf %237, %236 : vector<8x32xf32>
    %239 = arith.divf %237, %238 : vector<8x32xf32>
    %240 = vector.extract_strided_slice %233 {offsets = [0, 32], sizes = [8, 32], strides = [1, 1]} : vector<8x128xf32> to vector<8x32xf32>
    %241 = arith.negf %240 : vector<8x32xf32>
    %242 = math.exp %241 : vector<8x32xf32>
    %cst_64 = arith.constant 1.000000e+00 : f32
    %243 = vector.broadcast %cst_64 : f32 to vector<8x32xf32>
    %244 = arith.addf %243, %242 : vector<8x32xf32>
    %245 = arith.divf %243, %244 : vector<8x32xf32>
    %246 = vector.extract_strided_slice %233 {offsets = [0, 64], sizes = [8, 32], strides = [1, 1]} : vector<8x128xf32> to vector<8x32xf32>
    %247 = math.tanh %246 : vector<8x32xf32>
    %248 = vector.extract_strided_slice %233 {offsets = [0, 96], sizes = [8, 32], strides = [1, 1]} : vector<8x128xf32> to vector<8x32xf32>
    %249 = arith.negf %248 : vector<8x32xf32>
    %250 = math.exp %249 : vector<8x32xf32>
    %cst_65 = arith.constant 1.000000e+00 : f32
    %251 = vector.broadcast %cst_65 : f32 to vector<8x32xf32>
    %252 = arith.addf %251, %250 : vector<8x32xf32>
    %253 = arith.divf %251, %252 : vector<8x32xf32>
    %254 = arith.mulf %245, %220 : vector<8x32xf32>
    %255 = arith.mulf %239, %247 : vector<8x32xf32>
    %256 = arith.addf %254, %255 : vector<8x32xf32>
    %257 = math.tanh %256 : vector<8x32xf32>
    %258 = arith.mulf %253, %257 : vector<8x32xf32>
    %259 = arith.index_cast %c6_i32 : i32 to index
    %c0_66 = arith.constant 0 : index
    %c0_67 = arith.constant 0 : index
    %260 = vector.load %arg8[%259, %c0_66, %c0_67] : memref<8x8x32xf32, #tpu.memory_space<vmem>>, vector<1x8x32xf32>
    %261 = vector.shape_cast %260 : vector<1x8x32xf32> to vector<8x32xf32>
    %262 = vector.shape_cast %258 : vector<8x32xf32> to vector<1x8x32xf32>
    tpu.vector_store %arg8[%259, %c0_66, %c0_67], %262 {strides = array<i32>} : memref<8x8x32xf32, #tpu.memory_space<vmem>>, vector<1x8x32xf32>,
    %c7_i32 = arith.constant 7 : i32
    %263 = arith.index_cast %c7_i32 : i32 to index
    %c0_68 = arith.constant 0 : index
    %c0_69 = arith.constant 0 : index
    %264 = vector.load %arg8[%263, %c0_68, %c0_69] : memref<8x8x32xf32, #tpu.memory_space<vmem>>, vector<1x8x32xf32>
    %265 = vector.shape_cast %264 : vector<1x8x32xf32> to vector<8x32xf32>
    %266 = tpu.concatenate %265, %258 in 1 : vector<8x32xf32>, vector<8x32xf32> -> vector<8x64xf32>
    %cst_70 = arith.constant dense<0.000000e+00> : vector<8x128xf32>
    %267 = tpu.matmul %266, %4, %cst_70 {dimension_numbers = #tpu.dot_dimension_numbers<[1], [0], [0], [1], [0, 0, 1, 1], [], []>} : vector<8x64xf32>, vector<64x128xf32>, vector<8x128xf32> -> vector<8x128xf32>
    %268 = vector.broadcast %6 : vector<1x128xf32> to vector<8x128xf32>
    %269 = arith.addf %267, %268 : vector<8x128xf32>
    %270 = vector.extract_strided_slice %269 {offsets = [0, 0], sizes = [8, 32], strides = [1, 1]} : vector<8x128xf32> to vector<8x32xf32>
    %271 = arith.negf %270 : vector<8x32xf32>
    %272 = math.exp %271 : vector<8x32xf32>
    %cst_71 = arith.constant 1.000000e+00 : f32
    %273 = vector.broadcast %cst_71 : f32 to vector<8x32xf32>
    %274 = arith.addf %273, %272 : vector<8x32xf32>
    %275 = arith.divf %273, %274 : vector<8x32xf32>
    %276 = vector.extract_strided_slice %269 {offsets = [0, 32], sizes = [8, 32], strides = [1, 1]} : vector<8x128xf32> to vector<8x32xf32>
    %277 = arith.negf %276 : vector<8x32xf32>
    %278 = math.exp %277 : vector<8x32xf32>
    %cst_72 = arith.constant 1.000000e+00 : f32
    %279 = vector.broadcast %cst_72 : f32 to vector<8x32xf32>
    %280 = arith.addf %279, %278 : vector<8x32xf32>
    %281 = arith.divf %279, %280 : vector<8x32xf32>
    %282 = vector.extract_strided_slice %269 {offsets = [0, 64], sizes = [8, 32], strides = [1, 1]} : vector<8x128xf32> to vector<8x32xf32>
    %283 = math.tanh %282 : vector<8x32xf32>
    %284 = vector.extract_strided_slice %269 {offsets = [0, 96], sizes = [8, 32], strides = [1, 1]} : vector<8x128xf32> to vector<8x32xf32>
    %285 = arith.negf %284 : vector<8x32xf32>
    %286 = math.exp %285 : vector<8x32xf32>
    %cst_73 = arith.constant 1.000000e+00 : f32
    %287 = vector.broadcast %cst_73 : f32 to vector<8x32xf32>
    %288 = arith.addf %287, %286 : vector<8x32xf32>
    %289 = arith.divf %287, %288 : vector<8x32xf32>
    %290 = arith.mulf %281, %256 : vector<8x32xf32>
    %291 = arith.mulf %275, %283 : vector<8x32xf32>
    %292 = arith.addf %290, %291 : vector<8x32xf32>
    %293 = math.tanh %292 : vector<8x32xf32>
    %294 = arith.mulf %289, %293 : vector<8x32xf32>
    %295 = arith.index_cast %c7_i32 : i32 to index
    %c0_74 = arith.constant 0 : index
    %c0_75 = arith.constant 0 : index
    %296 = vector.load %arg8[%295, %c0_74, %c0_75] : memref<8x8x32xf32, #tpu.memory_space<vmem>>, vector<1x8x32xf32>
    %297 = vector.shape_cast %296 : vector<1x8x32xf32> to vector<8x32xf32>
    %298 = vector.shape_cast %294 : vector<8x32xf32> to vector<1x8x32xf32>
    tpu.vector_store %arg8[%295, %c0_74, %c0_75], %298 {strides = array<i32>} : memref<8x8x32xf32, #tpu.memory_space<vmem>>, vector<1x8x32xf32>,
    %c8_i32 = arith.constant 8 : i32
    %c0_76 = arith.constant 0 : index
    %c0_77 = arith.constant 0 : index
    %c0_78 = arith.constant 0 : index
    %299 = vector.load %arg6[%c0_76, %c0_77, %c0_78] : memref<1x8x32xf32, #tpu.memory_space<vmem>>, vector<1x8x32xf32>
    %300 = vector.shape_cast %299 : vector<1x8x32xf32> to vector<8x32xf32>
    %301 = vector.shape_cast %294 : vector<8x32xf32> to vector<1x8x32xf32>
    tpu.vector_store %arg6[%c0_76, %c0_77, %c0_78], %301 {strides = array<i32>} : memref<1x8x32xf32, #tpu.memory_space<vmem>>, vector<1x8x32xf32>,
    %c0_79 = arith.constant 0 : index
    %c0_80 = arith.constant 0 : index
    %c0_81 = arith.constant 0 : index
    %302 = vector.load %arg7[%c0_79, %c0_80, %c0_81] : memref<1x8x32xf32, #tpu.memory_space<vmem>>, vector<1x8x32xf32>
    %303 = vector.shape_cast %302 : vector<1x8x32xf32> to vector<8x32xf32>
    %304 = vector.shape_cast %292 : vector<8x32xf32> to vector<1x8x32xf32>
    tpu.vector_store %arg7[%c0_79, %c0_80, %c0_81], %304 {strides = array<i32>} : memref<1x8x32xf32, #tpu.memory_space<vmem>>, vector<1x8x32xf32>,
    return
  }
  func.func @transform_0(%arg0: i32) -> (i32, i32, i32) {
    %c0_i32 = arith.constant 0 : i32
    %c0_i32_0 = arith.constant 0 : i32
    %c0_i32_1 = arith.constant 0 : i32
    %c0_i32_2 = arith.constant 0 : i32
    return %c0_i32, %c0_i32_0, %c0_i32_1 : i32, i32, i32
  }
  func.func @transform_1(%arg0: i32) -> (i32, i32, i32) {
    %c0_i32 = arith.constant 0 : i32
    %c0_i32_0 = arith.constant 0 : i32
    %c0_i32_1 = arith.constant 0 : i32
    return %arg0, %c0_i32, %c0_i32_0 : i32, i32, i32
  }
  func.func @transform_2(%arg0: i32) -> (i32, i32, i32) {
    %c0_i32 = arith.constant 0 : i32
    %c0_i32_0 = arith.constant 0 : i32
    %c0_i32_1 = arith.constant 0 : i32
    return %arg0, %c0_i32, %c0_i32_0 : i32, i32, i32
  }
  func.func @transform_3(%arg0: i32) -> (i32, i32, i32) {
    %c0_i32 = arith.constant 0 : i32
    %c0_i32_0 = arith.constant 0 : i32
    %c0_i32_1 = arith.constant 0 : i32
    return %arg0, %c0_i32, %c0_i32_0 : i32, i32, i32
  }
  func.func @transform_4(%arg0: i32) -> (i32, i32, i32) {
    %c0_i32 = arith.constant 0 : i32
    %c0_i32_0 = arith.constant 0 : i32
    %c0_i32_1 = arith.constant 0 : i32
    return %arg0, %c0_i32, %c0_i32_0 : i32, i32, i32
  }
  func.func @transform_5(%arg0: i32) -> (i32, i32, i32) {
    %c0_i32 = arith.constant 0 : i32
    %c0_i32_0 = arith.constant 0 : i32
    %c0_i32_1 = arith.constant 0 : i32
    return %arg0, %c0_i32, %c0_i32_0 : i32, i32, i32
  }
  func.func @transform_6(%arg0: i32) -> (i32, i32, i32) {
    %c0_i32 = arith.constant 0 : i32
    %c0_i32_0 = arith.constant 0 : i32
    %c0_i32_1 = arith.constant 0 : i32
    return %arg0, %c0_i32, %c0_i32_0 : i32, i32, i32
  }
}

</mosaic_0001>

<llo_original>
// kernel: seq2seq_encoder_forward.1
$region0: #{seq2seq_encoder_forward.1}
  #allocation0 [shape = 'u32[]', space=smem, size = 0x4, offset = 0x4, fixed_abs, tag = 'smem constant byte address 0x4 - core index']
  #allocation1 [shape = 'u32[144,128]{1,0:T(1,128)}', space=vmem, size = 0x12000, scoped, tag = 'internal scratch']
  #allocation2 [shape = 'f32[8,8,32]{2,1,0:T(8,128)}', space=vmem, size = 0x8000, scoped, tag = 'scratch operand']
  %s0 = inlined_call_operand.vmem [shape: f32[8,8,32], index: 0, kind: input, shape index: {}]
  %s1 = inlined_call_operand.vmem [shape: f32[2,8,32], index: 1, kind: input, shape index: {}]
  %s2 = inlined_call_operand.vmem [shape: f32[2,8,32], index: 2, kind: input, shape index: {}]
  %s3 = inlined_call_operand.vmem [shape: f32[2,64,128], index: 3, kind: input, shape index: {}]
  %s4 = inlined_call_operand.vmem [shape: f32[2,1,128], index: 4, kind: input, shape index: {}]
  %s5 = inlined_call_operand.vmem [shape: f32[2,8,32], index: 5, kind: output, shape index: {0}]
  %s6 = inlined_call_operand.vmem [shape: f32[2,8,32], index: 6, kind: output, shape index: {1}]
  %7 = xla_tuple %s5, %s6
  %s8 = sld [smem:[#allocation0]]
  $region65: #{seq2seq_encoder_forward.1} parent=0
    _
  %s10 = ssub.s32 1, %s8
  %s11 = scalar_select 0, %s10, %s8
  loop: start=0, step=1, limit=4
  $region2: #{seq2seq_encoder_forward.1} parent=0 // loop_pre_header
    _
  $region3: #{seq2seq_encoder_forward.1} parent=0 // loop_header
    %s13 = sphi 0, %s17
    %p14 = scmp.ge.s32.totalorder %s13, 4
    %s21 = sphi 0, %s21
    %s23 = sphi 0, %s21
    %s24 = sphi 0, %s23
    %s38 = sphi 0, %s24
    %s44 = sphi 0, %s46
    %s47 = sphi 0, %s44
    %s48 = sphi 0, %s47
    %s64 = sphi 0, %s48
    %s70 = sphi 0, %s72
    %s73 = sphi 0, %s70
    %s74 = sphi 0, %s73
    %s90 = sphi 0, %s74
    %s96 = sphi 0, %s98
    %s99 = sphi 0, %s96
    %s100 = sphi 0, %s99
    %s116 = sphi 0, %s100
    %s122 = sphi 0, %s124
    %s125 = sphi 0, %s122
    %s126 = sphi 0, %s125
    %s142 = sphi 0, %s126
    %s148 = sphi 0, %s150
    %s151 = sphi 0, %s148
    %s152 = sphi 0, %s151
    %s168 = sphi 0, %s152
    %s174 = sphi 0, %s176
    %s177 = sphi 0, %s174
    %s178 = sphi 0, %s177
    %s194 = sphi 0, %s178
  $region4: #{seq2seq_encoder_forward.1} parent=0 // loop_header_branch
    %16 = sbr.rel (%p14) target = $region8
  $region5: #{seq2seq_encoder_forward.1} parent=0 // loop_body
    %s18 = ssub.s32 %s13, 1
    %s19 = ssub.s32 %s13, 2
    %s20 = sadd.s32 %s13, 1
    %s22 = sadd.s32 %s21, 1
    %p25 = scmp.eq.s32.totalorder %s13, 1
    %p26 = scmp.ne.s32.totalorder %s21, %s23
    %p27 = scmp.eq.s32.totalorder %s13, 0
    %p28 = por %p26, %p27
    %p29 = scmp.ne.s32.totalorder %s21, %s23
    %p30 = scmp.eq.s32.totalorder %s18, 1
    %p31 = por %p29, %p30
    %p32 = scmp.ne.s32.totalorder %s23, %s24
    %p33 = scmp.eq.s32.totalorder %s18, 0
    %p34 = por %p32, %p33
    %p35 = scmp.ne.s32.totalorder %s23, %s24
    %p36 = scmp.eq.s32.totalorder %s19, 1
    %p37 = por %p35, %p36
    %p39 = scmp.ne.s32.totalorder %s24, %s38
    %p40 = scmp.eq.s32.totalorder %s19, 0
    %p41 = por %p39, %p40
    %s42 = ssub.s32 %s13, %s20
    %p43 = scmp.eq.s32.totalorder %s42, 0
    %s45 = sadd.s32 %s44, 1
    %s46 = scalar_select %p43, %s44, %s45
    %p49 = pneg %p43
    %p50 = scmp.eq.s32.totalorder %s13, 1
    %p51 = por %p49, %p50
    %p52 = scmp.ne.s32.totalorder %s44, %s47
    %p53 = scmp.eq.s32.totalorder %s13, 0
    %p54 = por %p52, %p53
    %p55 = scmp.ne.s32.totalorder %s44, %s47
    %p56 = scmp.eq.s32.totalorder %s18, 1
    %p57 = por %p55, %p56
    %p58 = scmp.ne.s32.totalorder %s47, %s48
    %p59 = scmp.eq.s32.totalorder %s18, 0
    %p60 = por %p58, %p59
    %p61 = scmp.ne.s32.totalorder %s47, %s48
    %p62 = scmp.eq.s32.totalorder %s19, 1
    %p63 = por %p61, %p62
    %p65 = scmp.ne.s32.totalorder %s48, %s64
    %p66 = scmp.eq.s32.totalorder %s19, 0
    %p67 = por %p65, %p66
    %s68 = ssub.s32 %s13, %s20
    %p69 = scmp.eq.s32.totalorder %s68, 0
    %s71 = sadd.s32 %s70, 1
    %s72 = scalar_select %p69, %s70, %s71
    %p75 = pneg %p69
    %p76 = scmp.eq.s32.totalorder %s13, 1
    %p77 = por %p75, %p76
    %p78 = scmp.ne.s32.totalorder %s70, %s73
    %p79 = scmp.eq.s32.totalorder %s13, 0
    %p80 = por %p78, %p79
    %p81 = scmp.ne.s32.totalorder %s70, %s73
    %p82 = scmp.eq.s32.totalorder %s18, 1
    %p83 = por %p81, %p82
    %p84 = scmp.ne.s32.totalorder %s73, %s74
    %p85 = scmp.eq.s32.totalorder %s18, 0
    %p86 = por %p84, %p85
    %p87 = scmp.ne.s32.totalorder %s73, %s74
    %p88 = scmp.eq.s32.totalorder %s19, 1
    %p89 = por %p87, %p88
    %p91 = scmp.ne.s32.totalorder %s74, %s90
    %p92 = scmp.eq.s32.totalorder %s19, 0
    %p93 = por %p91, %p92
    %s94 = ssub.s32 %s13, %s20
    %p95 = scmp.eq.s32.totalorder %s94, 0
    %s97 = sadd.s32 %s96, 1
    %s98 = scalar_select %p95, %s96, %s97
    %p101 = pneg %p95
    %p102 = scmp.eq.s32.totalorder %s13, 1
    %p103 = por %p101, %p102
    %p104 = scmp.ne.s32.totalorder %s96, %s99
    %p105 = scmp.eq.s32.totalorder %s13, 0
    %p106 = por %p104, %p105
    %p107 = scmp.ne.s32.totalorder %s96, %s99
    %p108 = scmp.eq.s32.totalorder %s18, 1
    %p109 = por %p107, %p108
    %p110 = scmp.ne.s32.totalorder %s99, %s100
    %p111 = scmp.eq.s32.totalorder %s18, 0
    %p112 = por %p110, %p111
    %p113 = scmp.ne.s32.totalorder %s99, %s100
    %p114 = scmp.eq.s32.totalorder %s19, 1
    %p115 = por %p113, %p114
    %p117 = scmp.ne.s32.totalorder %s100, %s116
    %p118 = scmp.eq.s32.totalorder %s19, 0
    %p119 = por %p117, %p118
    %s120 = ssub.s32 %s13, %s20
    %p121 = scmp.eq.s32.totalorder %s120, 0
    %s123 = sadd.s32 %s122, 1
    %s124 = scalar_select %p121, %s122, %s123
    %p127 = pneg %p121
    %p128 = scmp.eq.s32.totalorder %s13, 1
    %p129 = por %p127, %p128
    %p130 = scmp.ne.s32.totalorder %s122, %s125
    %p131 = scmp.eq.s32.totalorder %s13, 0
    %p132 = por %p130, %p131
    %p133 = scmp.ne.s32.totalorder %s122, %s125
    %p134 = scmp.eq.s32.totalorder %s18, 1
    %p135 = por %p133, %p134
    %p136 = scmp.ne.s32.totalorder %s125, %s126
    %p137 = scmp.eq.s32.totalorder %s18, 0
    %p138 = por %p136, %p137
    %p139 = scmp.ne.s32.totalorder %s125, %s126
    %p140 = scmp.eq.s32.totalorder %s19, 1
    %p141 = por %p139, %p140
    %p143 = scmp.ne.s32.totalorder %s126, %s142
    %p144 = scmp.eq.s32.totalorder %s19, 0
    %p145 = por %p143, %p144
    %s146 = ssub.s32 %s13, %s20
    %p147 = scmp.eq.s32.totalorder %s146, 0
    %s149 = sadd.s32 %s148, 1
    %s150 = scalar_select %p147, %s148, %s149
    %p153 = pneg %p147
    %p154 = scmp.eq.s32.totalorder %s13, 1
    %p155 = por %p153, %p154
    %p156 = scmp.ne.s32.totalorder %s148, %s151
    %p157 = scmp.eq.s32.totalorder %s13, 0
    %p158 = por %p156, %p157
    %p159 = scmp.ne.s32.totalorder %s148, %s151
    %p160 = scmp.eq.s32.totalorder %s18, 1
    %p161 = por %p159, %p160
    %p162 = scmp.ne.s32.totalorder %s151, %s152
    %p163 = scmp.eq.s32.totalorder %s18, 0
    %p164 = por %p162, %p163
    %p165 = scmp.ne.s32.totalorder %s151, %s152
    %p166 = scmp.eq.s32.totalorder %s19, 1
    %p167 = por %p165, %p166
    %p169 = scmp.ne.s32.totalorder %s152, %s168
    %p170 = scmp.eq.s32.totalorder %s19, 0
    %p171 = por %p169, %p170
    %s172 = ssub.s32 %s13, %s20
    %p173 = scmp.eq.s32.totalorder %s172, 0
    %s175 = sadd.s32 %s174, 1
    %s176 = scalar_select %p173, %s174, %s175
    %p179 = pneg %p173
    %p180 = scmp.eq.s32.totalorder %s13, 1
    %p181 = por %p179, %p180
    %p182 = scmp.ne.s32.totalorder %s174, %s177
    %p183 = scmp.eq.s32.totalorder %s13, 0
    %p184 = por %p182, %p183
    %p185 = scmp.ne.s32.totalorder %s174, %s177
    %p186 = scmp.eq.s32.totalorder %s18, 1
    %p187 = por %p185, %p186
    %p188 = scmp.ne.s32.totalorder %s177, %s178
    %p189 = scmp.eq.s32.totalorder %s18, 0
    %p190 = por %p188, %p189
    %p191 = scmp.ne.s32.totalorder %s177, %s178
    %p192 = scmp.eq.s32.totalorder %s19, 1
    %p193 = por %p191, %p192
    %p195 = scmp.ne.s32.totalorder %s178, %s194
    %p196 = scmp.eq.s32.totalorder %s19, 0
    %p197 = por %p195, %p196
    %p198 = scmp.le.s32.totalorder 1, %s13
    %p199 = scmp.lt.s32.totalorder %s13, 3
    %p200 = pnand %p198, %p199
    %p201 = pneg %p200
    // Predicated region
    $region9: #{seq2seq_encoder_forward.1} parent=5 // pred_check
      _
    $region10: #{seq2seq_encoder_forward.1} parent=5 // pred_check_branch
      %203 = sbr.rel (%p200) target = $region12
    $region11: #{seq2seq_encoder_forward.1} parent=5 // pred_region
      %s204 = ssub.s32 %s13, 1
      // Predicated region
      $region13: #{seq2seq_encoder_forward.1} parent=11 // pred_check
        %p205 = pneg %p34
      $region14: #{seq2seq_encoder_forward.1} parent=11 // pred_check_branch
        %207 = sbr.rel (%p205) target = $region16
      $region15: #{seq2seq_encoder_forward.1} parent=11 // pred_region
        _
      $region16: #{seq2seq_encoder_forward.1} parent=11 // pred_fallthru
        _
    $region12: #{seq2seq_encoder_forward.1} parent=5 // pred_fallthru
      _
    %p208 = scmp.lt.s32.totalorder %s13, 2
    // Predicated region
    $region17: #{seq2seq_encoder_forward.1} parent=5 // pred_check
      %p209 = pneg %p208
    $region18: #{seq2seq_encoder_forward.1} parent=5 // pred_check_branch
      %211 = sbr.rel (%p209) target = $region20
    $region19: #{seq2seq_encoder_forward.1} parent=5 // pred_region
      // Predicated region
      $region21: #{seq2seq_encoder_forward.1} parent=19 // pred_check
        %p212 = pneg %p54
      $region22: #{seq2seq_encoder_forward.1} parent=19 // pred_check_branch
        %214 = sbr.rel (%p212) target = $region24
      $region23: #{seq2seq_encoder_forward.1} parent=19 // pred_region
        %p215 = scmp.lt.s32.totalorder %s13, 1
        %s216 = scalar_select %p215, %s13, 1
        %s217 = smul.addr %s216, 8
        %s218 = scalar_lea.vmem %s1, %s217
      $region24: #{seq2seq_encoder_forward.1} parent=19 // pred_fallthru
        _
      // Predicated region
      $region25: #{seq2seq_encoder_forward.1} parent=19 // pred_check
        %p219 = pneg %p80
      $region26: #{seq2seq_encoder_forward.1} parent=19 // pred_check_branch
        %221 = sbr.rel (%p219) target = $region28
      $region27: #{seq2seq_encoder_forward.1} parent=19 // pred_region
        %p222 = scmp.lt.s32.totalorder %s13, 1
        %s223 = scalar_select %p222, %s13, 1
        %s224 = smul.addr %s223, 8
        %s225 = scalar_lea.vmem %s2, %s224
      $region28: #{seq2seq_encoder_forward.1} parent=19 // pred_fallthru
        _
      // Predicated region
      $region29: #{seq2seq_encoder_forward.1} parent=19 // pred_check
        %p226 = pneg %p106
      $region30: #{seq2seq_encoder_forward.1} parent=19 // pred_check_branch
        %228 = sbr.rel (%p226) target = $region32
      $region31: #{seq2seq_encoder_forward.1} parent=19 // pred_region
        %p229 = scmp.lt.s32.totalorder %s13, 1
        %s230 = scalar_select %p229, %s13, 1
        %s231 = smul.addr %s230, 8
        %s232 = smul.addr %s231, 8
        %s233 = scalar_lea.vmem %s3, %s232
      $region32: #{seq2seq_encoder_forward.1} parent=19 // pred_fallthru
        _
      // Predicated region
      $region33: #{seq2seq_encoder_forward.1} parent=19 // pred_check
        %p234 = pneg %p132
      $region34: #{seq2seq_encoder_forward.1} parent=19 // pred_check_branch
        %236 = sbr.rel (%p234) target = $region36
      $region35: #{seq2seq_encoder_forward.1} parent=19 // pred_region
        %p237 = scmp.lt.s32.totalorder %s13, 1
        %s238 = scalar_select %p237, %s13, 1
        %s239 = scalar_lea.vmem %s4, %s238
      $region36: #{seq2seq_encoder_forward.1} parent=19 // pred_fallthru
        _
    $region20: #{seq2seq_encoder_forward.1} parent=5 // pred_fallthru
      _
    %p240 = scmp.le.s32.totalorder 1, %s13
    %p241 = scmp.lt.s32.totalorder %s13, 3
    %p242 = pnand %p240, %p241
    %p243 = pneg %p242
    // Predicated region
    $region37: #{seq2seq_encoder_forward.1} parent=5 // pred_check
      _
    $region38: #{seq2seq_encoder_forward.1} parent=5 // pred_check_branch
      %245 = sbr.rel (%p242) target = $region40
    $region39: #{seq2seq_encoder_forward.1} parent=5 // pred_region
      %s246 = ssub.s32 %s13, 1
      %p247 = pneg %p34
      %p248 = pneg %p31
      %p249 = scmp.lt.s32.totalorder %s18, 1
      %s250 = scalar_select %p249, %s18, 1
      %s251 = smul.addr %s250, 8
      %s252 = scalar_lea.vmem %s1, %s251
      %p253 = pneg %p60
      %p254 = pneg %p57
      %p255 = scmp.lt.s32.totalorder %s18, 1
      %s256 = scalar_select %p255, %s18, 1
      %s257 = smul.addr %s256, 8
      %s258 = scalar_lea.vmem %s2, %s257
      %p259 = pneg %p86
      %p260 = pneg %p83
      %p261 = scmp.lt.s32.totalorder %s18, 1
      %s262 = scalar_select %p261, %s18, 1
      %s263 = smul.addr %s262, 8
      %s264 = smul.addr %s263, 8
      %s265 = scalar_lea.vmem %s3, %s264
      %p266 = pneg %p112
      %p267 = pneg %p109
      %p268 = scmp.lt.s32.totalorder %s18, 1
      %s269 = scalar_select %p268, %s18, 1
      %s270 = scalar_lea.vmem %s4, %s269
      %p271 = pneg %p138
      %p272 = pneg %p135
      %p273 = pneg %p164
      %p274 = pneg %p161
      %p275 = scmp.lt.s32.totalorder %s18, 1
      %s276 = scalar_select %p275, %s18, 1
      %s277 = smul.addr %s276, 8
      %s278 = scalar_lea.vmem %s5, %s277
      %p279 = pneg %p190
      %p280 = pneg %p187
      %p281 = scmp.lt.s32.totalorder %s18, 1
      %s282 = scalar_select %p281, %s18, 1
      %s283 = smul.addr %s282, 8
      %s284 = scalar_lea.vmem %s6, %s283
      %p285 = scmp.lt.s32.totalorder %s18, 1
      %s286 = scalar_select %p285, %s18, 1
      %s287 = smul.addr %s286, 8
      %s288 = scalar_lea.vmem %s1, %s287
      %p289 = scmp.lt.s32.totalorder %s18, 1
      %s290 = scalar_select %p289, %s18, 1
      %s291 = smul.addr %s290, 8
      %s292 = scalar_lea.vmem %s2, %s291
      %p293 = scmp.lt.s32.totalorder %s18, 1
      %s294 = scalar_select %p293, %s18, 1
      %s295 = smul.addr %s294, 8
      %s296 = smul.addr %s295, 8
      %s297 = scalar_lea.vmem %s3, %s296
      %p298 = scmp.lt.s32.totalorder %s18, 1
      %s299 = scalar_select %p298, %s18, 1
      %s300 = scalar_lea.vmem %s4, %s299
      %p301 = scmp.lt.s32.totalorder %s18, 1
      %s302 = scalar_select %p301, %s18, 1
      %s303 = smul.addr %s302, 8
      %s304 = scalar_lea.vmem %s5, %s303
      %p305 = scmp.lt.s32.totalorder %s18, 1
      %s306 = scalar_select %p305, %s18, 1
      %s307 = smul.addr %s306, 8
      %s308 = scalar_lea.vmem %s6, %s307
      %p309 = scmp.eq.s32.totalorder %s18, 0
      // Predicated region
      $region41: #{seq2seq_encoder_forward.1} parent=39 // pred_check
        %p310 = pneg %p309
      $region42: #{seq2seq_encoder_forward.1} parent=39 // pred_check_branch
        %312 = sbr.rel (%p310) target = $region44
      $region43: #{seq2seq_encoder_forward.1} parent=39 // pred_region
        %v313 = vld [vmem:[%s0] sm:$0xff]
        %v314 = vld [vmem:[%s0 + $0x8] sm:$0xff]
        %v315 = vld [vmem:[%s0 + $0x10] sm:$0xff]
        %v316 = vld [vmem:[%s0 + $0x18] sm:$0xff]
        %v317 = vld [vmem:[%s0 + $0x20] sm:$0xff]
        %v318 = vld [vmem:[%s0 + $0x28] sm:$0xff]
        %v319 = vld [vmem:[%s0 + $0x30] sm:$0xff]
        %v320 = vld [vmem:[%s0 + $0x38] sm:$0xff]
        %vm321 = vcmask 261120
        %322 = vst.msk [vmem:[#allocation2] sm:$0xff] %vm321, %v313
        %323 = vst.msk [vmem:[#allocation2 + $0x8] sm:$0xff] %vm321, %v314
        %324 = vst.msk [vmem:[#allocation2 + $0x10] sm:$0xff] %vm321, %v315
        %325 = vst.msk [vmem:[#allocation2 + $0x18] sm:$0xff] %vm321, %v316
        %326 = vst.msk [vmem:[#allocation2 + $0x20] sm:$0xff] %vm321, %v317
        %327 = vst.msk [vmem:[#allocation2 + $0x28] sm:$0xff] %vm321, %v318
        %328 = vst.msk [vmem:[#allocation2 + $0x30] sm:$0xff] %vm321, %v319
        %329 = vst.msk [vmem:[#allocation2 + $0x38] sm:$0xff] %vm321, %v320
      $region44: #{seq2seq_encoder_forward.1} parent=39 // pred_fallthru
        _
      %v330 = vld [vmem:[%s297] sm:$0xff]
      %v331 = vld [vmem:[%s297 + $0x8] sm:$0xff]
      %v332 = vld [vmem:[%s297 + $0x10] sm:$0xff]
      %v333 = vld [vmem:[%s297 + $0x18] sm:$0xff]
      %v334 = vld [vmem:[%s297 + $0x20] sm:$0xff]
      %v335 = vld [vmem:[%s297 + $0x28] sm:$0xff]
      %v336 = vld [vmem:[%s297 + $0x30] sm:$0xff]
      %v337 = vld [vmem:[%s297 + $0x38] sm:$0xff]
      %v338 = vld [vmem:[%s300] sm:$0x1]
      %v339 = vld [vmem:[%s288] sm:$0xff]
      %v340 = vld [vmem:[%s292] sm:$0xff]
      %v341 = vld [vmem:[#allocation2] sm:$0xff]
      %343 = vrot.lane.b32.xlu0 %v339, 32
      %v344 = vpop.permute.xlu0 %343
      %vm346 = vcmask 261120
      %v347 = vsel %vm346, %v341, %v344
      %v349 = vlaneseq
      %v350 = vshrl.u32 %v349, 7
      %v351 = vsub.s32 0, %v350
      %v352 = vrot.slane %v338, %v351
      %vm354 = vcmask 523264
      %v356 = vsel %vm354, %v347, 0
      %358 = vmatprep.subr.mxu0 0.0
      %359 = vmatpush1.msra.mxu0 %v330
      %360 = vmatprep.subr.mxu0 0.0
      %361 = vmatpush1.msra.mxu0 %v331
      %362 = vmatprep.subr.mxu0 0.0
      %363 = vmatpush1.msra.mxu0 %v332
      %364 = vmatprep.subr.mxu0 0.0
      %365 = vmatpush1.msra.mxu0 %v333
      %366 = vmatprep.subr.mxu0 0.0
      %367 = vmatpush1.msra.mxu0 %v334
      %368 = vmatprep.subr.mxu0 0.0
      %369 = vmatpush1.msra.mxu0 %v335
      %370 = vmatprep.subr.mxu0 0.0
      %371 = vmatpush1.msra.mxu0 %v336
      %372 = vmatprep.subr.mxu0 0.0
      %373 = vmatpush1.msra.mxu0 %v337
      %374 = vmatprep.subr.mxu0 0.0
      %375 = vmatpush1.msra.mxu0 0.0
      %376 = vmatprep.subr.mxu0 0.0
      %377 = vmatpush1.msra.mxu0 0.0
      %378 = vmatprep.subr.mxu0 0.0
      %379 = vmatpush1.msra.mxu0 0.0
      %380 = vmatprep.subr.mxu0 0.0
      %381 = vmatpush1.msra.mxu0 0.0
      %382 = vmatprep.subr.mxu0 0.0
      %383 = vmatpush1.msra.mxu0 0.0
      %384 = vmatprep.subr.mxu0 0.0
      %385 = vmatpush1.msra.mxu0 0.0
      %386 = vmatprep.subr.mxu0 0.0
      %387 = vmatpush1.msra.mxu0 0.0
      %388 = vmatprep.subr.mxu0 0.0
      %389 = vmatpush1.msra.mxu0 0.0
      %390 = vmatprep.subr.mxu0 0.0
      %391 = vmatpush1.msra.mxu0 0.0
      %392 = vmatprep.subr.mxu0 0.0
      %393 = vmatpush1.msra.mxu0 0.0
      %394 = vmatprep.subr.mxu0 0.0
      %395 = vmatpush1.msra.mxu0 0.0
      %396 = vmatprep.subr.mxu0 0.0
      %397 = vmatpush1.msra.mxu0 0.0
      %398 = vmatprep.subr.mxu0 0.0
      %399 = vmatpush1.msra.mxu0 0.0
      %400 = vmatprep.subr.mxu0 0.0
      %401 = vmatpush1.msra.mxu0 0.0
      %402 = vmatprep.subr.mxu0 0.0
      %403 = vmatpush1.msra.mxu0 0.0
      %404 = vmatprep.subr.mxu0 0.0
      %405 = vmatpush1.msra.mxu0 0.0
      %406 = vmatprep.subr.mxu0 0.0
      %407 = vmatpush1.msra.mxu0 0.0
      %408 = vmatprep.subr.mxu0 0.0
      %409 = vmatpush1.msra.mxu0 0.0
      %410 = vmatprep.subr.mxu0 0.0
      %411 = vmatpush1.msra.mxu0 0.0
      %412 = vmatprep.subr.mxu0 0.0
      %413 = vmatpush1.msra.mxu0 0.0
      %414 = vmatprep.subr.mxu0 0.0
      %415 = vmatpush1.msra.mxu0 0.0
      %416 = vmatprep.subr.mxu0 0.0
      %417 = vmatpush1.msra.mxu0 0.0
      %418 = vmatprep.subr.mxu0 0.0
      %419 = vmatpush1.msra.mxu0 0.0
      %420 = vmatprep.subr.mxu0 0.0
      %421 = vmatpush1.msra.mxu0 0.0
      %422 = vmatprep.mubr.f32.mxu0 0.0
      %423 = vmatmul.mubr.f32.gmra.mrb[0].mxu0 %v356
      %v424 = vpop.f32.mrb[0].mxu0
      %v425 = vadd.f32 %v352, %v424
      %v426 = vpop.f32.mrb[0].mxu0
      %427 = vdwg.mxu0
      %v428 = vxor.u32 %v425, 2147483648
      %v429 = vmul.f32 %v428, 1.442695
      %v430 = vpow.pop %v429
      %v431 = vadd.f32 %v430, 1.0
      %v432 = vrcp.pop %v431
      %v433 = vmul.f32 1.0, %v432
      %v434 = vtanh.pop %v425
      %436 = vrot.lane.b32.xlu0 %v340, 32
      %v437 = vpop.permute.xlu0 %436
      %v439 = vmul.f32 %v433, %v437
      %441 = vrot.lane.b32.xlu0 %v434, 64
      %v442 = vpop.permute.xlu0 %441
      %v444 = vmul.f32 %v433, %v442
      %446 = vrot.lane.b32.xlu0 %v444, 32
      %v447 = vpop.permute.xlu0 %446
      %v449 = vadd.f32 %v439, %v447
      %v450 = vtanh.pop %v449
      %452 = vrot.lane.b32.xlu0 %v450, 64
      %v453 = vpop.permute.xlu0 %452
      %v455 = vmul.f32 %v433, %v453
      %457 = vrot.lane.b32.xlu0 %v455, 32
      %v458 = vpop.permute.xlu0 %457
      %460 = vst.msk [vmem:[#allocation2] sm:$0xff] %vm346, %v458
      %s461 = scalar_lea.vmem [#allocation2], 8
      %v462 = vld [vmem:[%s461] sm:$0xff]
      %463 = vrot.lane.b32.xlu0 %v455, 64
      %v464 = vpop.permute.xlu0 %463
      %v466 = vsel %vm346, %v462, %v464
      %v468 = vsel %vm354, %v466, 0
      %470 = vmatprep.subr.mxu0 0.0
      %471 = vmatpush1.msra.mxu0 %v330
      %472 = vmatprep.subr.mxu0 0.0
      %473 = vmatpush1.msra.mxu0 %v331
      %474 = vmatprep.subr.mxu0 0.0
      %475 = vmatpush1.msra.mxu0 %v332
      %476 = vmatprep.subr.mxu0 0.0
      %477 = vmatpush1.msra.mxu0 %v333
      %478 = vmatprep.subr.mxu0 0.0
      %479 = vmatpush1.msra.mxu0 %v334
      %480 = vmatprep.subr.mxu0 0.0
      %481 = vmatpush1.msra.mxu0 %v335
      %482 = vmatprep.subr.mxu0 0.0
      %483 = vmatpush1.msra.mxu0 %v336
      %484 = vmatprep.subr.mxu0 0.0
      %485 = vmatpush1.msra.mxu0 %v337
      %486 = vmatprep.subr.mxu0 0.0
      %487 = vmatpush1.msra.mxu0 0.0
      %488 = vmatprep.subr.mxu0 0.0
      %489 = vmatpush1.msra.mxu0 0.0
      %490 = vmatprep.subr.mxu0 0.0
      %491 = vmatpush1.msra.mxu0 0.0
      %492 = vmatprep.subr.mxu0 0.0
      %493 = vmatpush1.msra.mxu0 0.0
      %494 = vmatprep.subr.mxu0 0.0
      %495 = vmatpush1.msra.mxu0 0.0
      %496 = vmatprep.subr.mxu0 0.0
      %497 = vmatpush1.msra.mxu0 0.0
      %498 = vmatprep.subr.mxu0 0.0
      %499 = vmatpush1.msra.mxu0 0.0
      %500 = vmatprep.subr.mxu0 0.0
      %501 = vmatpush1.msra.mxu0 0.0
      %502 = vmatprep.subr.mxu0 0.0
      %503 = vmatpush1.msra.mxu0 0.0
      %504 = vmatprep.subr.mxu0 0.0
      %505 = vmatpush1.msra.mxu0 0.0
      %506 = vmatprep.subr.mxu0 0.0
      %507 = vmatpush1.msra.mxu0 0.0
      %508 = vmatprep.subr.mxu0 0.0
      %509 = vmatpush1.msra.mxu0 0.0
      %510 = vmatprep.subr.mxu0 0.0
      %511 = vmatpush1.msra.mxu0 0.0
      %512 = vmatprep.subr.mxu0 0.0
      %513 = vmatpush1.msra.mxu0 0.0
      %514 = vmatprep.subr.mxu0 0.0
      %515 = vmatpush1.msra.mxu0 0.0
      %516 = vmatprep.subr.mxu0 0.0
      %517 = vmatpush1.msra.mxu0 0.0
      %518 = vmatprep.subr.mxu0 0.0
      %519 = vmatpush1.msra.mxu0 0.0
      %520 = vmatprep.subr.mxu0 0.0
      %521 = vmatpush1.msra.mxu0 0.0
      %522 = vmatprep.subr.mxu0 0.0
      %523 = vmatpush1.msra.mxu0 0.0
      %524 = vmatprep.subr.mxu0 0.0
      %525 = vmatpush1.msra.mxu0 0.0
      %526 = vmatprep.subr.mxu0 0.0
      %527 = vmatpush1.msra.mxu0 0.0
      %528 = vmatprep.subr.mxu0 0.0
      %529 = vmatpush1.msra.mxu0 0.0
      %530 = vmatprep.subr.mxu0 0.0
      %531 = vmatpush1.msra.mxu0 0.0
      %532 = vmatprep.subr.mxu0 0.0
      %533 = vmatpush1.msra.mxu0 0.0
      %534 = vmatprep.mubr.f32.mxu0 0.0
      %535 = vmatmul.mubr.f32.gmra.mrb[0].mxu0 %v468
      %v536 = vpop.f32.mrb[0].mxu0
      %v537 = vadd.f32 %v352, %v536
      %v538 = vpop.f32.mrb[0].mxu0
      %539 = vdwg.mxu0
      %v540 = vxor.u32 %v537, 2147483648
      %v541 = vmul.f32 %v540, 1.442695
      %v542 = vpow.pop %v541
      %v543 = vadd.f32 %v542, 1.0
      %v544 = vrcp.pop %v543
      %v545 = vmul.f32 1.0, %v544
      %v546 = vtanh.pop %v537
      %v547 = vmul.f32 %v545, %v449
      %549 = vrot.lane.b32.xlu0 %v546, 64
      %v550 = vpop.permute.xlu0 %549
      %v552 = vmul.f32 %v545, %v550
      %554 = vrot.lane.b32.xlu0 %v552, 32
      %v555 = vpop.permute.xlu0 %554
      %v557 = vadd.f32 %v547, %v555
      %v558 = vtanh.pop %v557
      %560 = vrot.lane.b32.xlu0 %v558, 64
      %v561 = vpop.permute.xlu0 %560
      %v563 = vmul.f32 %v545, %v561
      %565 = vrot.lane.b32.xlu0 %v563, 32
      %v566 = vpop.permute.xlu0 %565
      %568 = vst.msk [vmem:[%s461] sm:$0xff] %vm346, %v566
      %s569 = scalar_lea.vmem [#allocation2], 16
      %v570 = vld [vmem:[%s569] sm:$0xff]
      %571 = vrot.lane.b32.xlu0 %v563, 64
      %v572 = vpop.permute.xlu0 %571
      %v574 = vsel %vm346, %v570, %v572
      %v576 = vsel %vm354, %v574, 0
      %578 = vmatprep.subr.mxu0 0.0
      %579 = vmatpush1.msra.mxu0 %v330
      %580 = vmatprep.subr.mxu0 0.0
      %581 = vmatpush1.msra.mxu0 %v331
      %582 = vmatprep.subr.mxu0 0.0
      %583 = vmatpush1.msra.mxu0 %v332
      %584 = vmatprep.subr.mxu0 0.0
      %585 = vmatpush1.msra.mxu0 %v333
      %586 = vmatprep.subr.mxu0 0.0
      %587 = vmatpush1.msra.mxu0 %v334
      %588 = vmatprep.subr.mxu0 0.0
      %589 = vmatpush1.msra.mxu0 %v335
      %590 = vmatprep.subr.mxu0 0.0
      %591 = vmatpush1.msra.mxu0 %v336
      %592 = vmatprep.subr.mxu0 0.0
      %593 = vmatpush1.msra.mxu0 %v337
      %594 = vmatprep.subr.mxu0 0.0
      %595 = vmatpush1.msra.mxu0 0.0
      %596 = vmatprep.subr.mxu0 0.0
      %597 = vmatpush1.msra.mxu0 0.0
      %598 = vmatprep.subr.mxu0 0.0
      %599 = vmatpush1.msra.mxu0 0.0
      %600 = vmatprep.subr.mxu0 0.0
      %601 = vmatpush1.msra.mxu0 0.0
      %602 = vmatprep.subr.mxu0 0.0
      %603 = vmatpush1.msra.mxu0 0.0
      %604 = vmatprep.subr.mxu0 0.0
      %605 = vmatpush1.msra.mxu0 0.0
      %606 = vmatprep.subr.mxu0 0.0
      %607 = vmatpush1.msra.mxu0 0.0
      %608 = vmatprep.subr.mxu0 0.0
      %609 = vmatpush1.msra.mxu0 0.0
      %610 = vmatprep.subr.mxu0 0.0
      %611 = vmatpush1.msra.mxu0 0.0
      %612 = vmatprep.subr.mxu0 0.0
      %613 = vmatpush1.msra.mxu0 0.0
      %614 = vmatprep.subr.mxu0 0.0
      %615 = vmatpush1.msra.mxu0 0.0
      %616 = vmatprep.subr.mxu0 0.0
      %617 = vmatpush1.msra.mxu0 0.0
      %618 = vmatprep.subr.mxu0 0.0
      %619 = vmatpush1.msra.mxu0 0.0
      %620 = vmatprep.subr.mxu0 0.0
      %621 = vmatpush1.msra.mxu0 0.0
      %622 = vmatprep.subr.mxu0 0.0
      %623 = vmatpush1.msra.mxu0 0.0
      %624 = vmatprep.subr.mxu0 0.0
      %625 = vmatpush1.msra.mxu0 0.0
      %626 = vmatprep.subr.mxu0 0.0
      %627 = vmatpush1.msra.mxu0 0.0
      %628 = vmatprep.subr.mxu0 0.0
      %629 = vmatpush1.msra.mxu0 0.0
      %630 = vmatprep.subr.mxu0 0.0
      %631 = vmatpush1.msra.mxu0 0.0
      %632 = vmatprep.subr.mxu0 0.0
      %633 = vmatpush1.msra.mxu0 0.0
      %634 = vmatprep.subr.mxu0 0.0
      %635 = vmatpush1.msra.mxu0 0.0
      %636 = vmatprep.subr.mxu0 0.0
      %637 = vmatpush1.msra.mxu0 0.0
      %638 = vmatprep.subr.mxu0 0.0
      %639 = vmatpush1.msra.mxu0 0.0
      %640 = vmatprep.subr.mxu0 0.0
      %641 = vmatpush1.msra.mxu0 0.0
      %642 = vmatprep.mubr.f32.mxu0 0.0
      %643 = vmatmul.mubr.f32.gmra.mrb[0].mxu0 %v576
      %v644 = vpop.f32.mrb[0].mxu0
      %v645 = vadd.f32 %v352, %v644
      %v646 = vpop.f32.mrb[0].mxu0
      %647 = vdwg.mxu0
      %v648 = vxor.u32 %v645, 2147483648
      %v649 = vmul.f32 %v648, 1.442695
      %v650 = vpow.pop %v649
      %v651 = vadd.f32 %v650, 1.0
      %v652 = vrcp.pop %v651
      %v653 = vmul.f32 1.0, %v652
      %v654 = vtanh.pop %v645
      %v655 = vmul.f32 %v653, %v557
      %657 = vrot.lane.b32.xlu0 %v654, 64
      %v658 = vpop.permute.xlu0 %657
      %v660 = vmul.f32 %v653, %v658
      %662 = vrot.lane.b32.xlu0 %v660, 32
      %v663 = vpop.permute.xlu0 %662
      %v665 = vadd.f32 %v655, %v663
      %v666 = vtanh.pop %v665
      %668 = vrot.lane.b32.xlu0 %v666, 64
      %v669 = vpop.permute.xlu0 %668
      %v671 = vmul.f32 %v653, %v669
      %673 = vrot.lane.b32.xlu0 %v671, 32
      %v674 = vpop.permute.xlu0 %673
      %676 = vst.msk [vmem:[%s569] sm:$0xff] %vm346, %v674
      %s677 = scalar_lea.vmem [#allocation2], 24
      %v678 = vld [vmem:[%s677] sm:$0xff]
      %679 = vrot.lane.b32.xlu0 %v671, 64
      %v680 = vpop.permute.xlu0 %679
      %v682 = vsel %vm346, %v678, %v680
      %v684 = vsel %vm354, %v682, 0
      %686 = vmatprep.subr.mxu0 0.0
      %687 = vmatpush1.msra.mxu0 %v330
      %688 = vmatprep.subr.mxu0 0.0
      %689 = vmatpush1.msra.mxu0 %v331
      %690 = vmatprep.subr.mxu0 0.0
      %691 = vmatpush1.msra.mxu0 %v332
      %692 = vmatprep.subr.mxu0 0.0
      %693 = vmatpush1.msra.mxu0 %v333
      %694 = vmatprep.subr.mxu0 0.0
      %695 = vmatpush1.msra.mxu0 %v334
      %696 = vmatprep.subr.mxu0 0.0
      %697 = vmatpush1.msra.mxu0 %v335
      %698 = vmatprep.subr.mxu0 0.0
      %699 = vmatpush1.msra.mxu0 %v336
      %700 = vmatprep.subr.mxu0 0.0
      %701 = vmatpush1.msra.mxu0 %v337
      %702 = vmatprep.subr.mxu0 0.0
      %703 = vmatpush1.msra.mxu0 0.0
      %704 = vmatprep.subr.mxu0 0.0
      %705 = vmatpush1.msra.mxu0 0.0
      %706 = vmatprep.subr.mxu0 0.0
      %707 = vmatpush1.msra.mxu0 0.0
      %708 = vmatprep.subr.mxu0 0.0
      %709 = vmatpush1.msra.mxu0 0.0
      %710 = vmatprep.subr.mxu0 0.0
      %711 = vmatpush1.msra.mxu0 0.0
      %712 = vmatprep.subr.mxu0 0.0
      %713 = vmatpush1.msra.mxu0 0.0
      %714 = vmatprep.subr.mxu0 0.0
      %715 = vmatpush1.msra.mxu0 0.0
      %716 = vmatprep.subr.mxu0 0.0
      %717 = vmatpush1.msra.mxu0 0.0
      %718 = vmatprep.subr.mxu0 0.0
      %719 = vmatpush1.msra.mxu0 0.0
      %720 = vmatprep.subr.mxu0 0.0
      %721 = vmatpush1.msra.mxu0 0.0
      %722 = vmatprep.subr.mxu0 0.0
      %723 = vmatpush1.msra.mxu0 0.0
      %724 = vmatprep.subr.mxu0 0.0
      %725 = vmatpush1.msra.mxu0 0.0
      %726 = vmatprep.subr.mxu0 0.0
      %727 = vmatpush1.msra.mxu0 0.0
      %728 = vmatprep.subr.mxu0 0.0
      %729 = vmatpush1.msra.mxu0 0.0
      %730 = vmatprep.subr.mxu0 0.0
      %731 = vmatpush1.msra.mxu0 0.0
      %732 = vmatprep.subr.mxu0 0.0
      %733 = vmatpush1.msra.mxu0 0.0
      %734 = vmatprep.subr.mxu0 0.0
      %735 = vmatpush1.msra.mxu0 0.0
      %736 = vmatprep.subr.mxu0 0.0
      %737 = vmatpush1.msra.mxu0 0.0
      %738 = vmatprep.subr.mxu0 0.0
      %739 = vmatpush1.msra.mxu0 0.0
      %740 = vmatprep.subr.mxu0 0.0
      %741 = vmatpush1.msra.mxu0 0.0
      %742 = vmatprep.subr.mxu0 0.0
      %743 = vmatpush1.msra.mxu0 0.0
      %744 = vmatprep.subr.mxu0 0.0
      %745 = vmatpush1.msra.mxu0 0.0
      %746 = vmatprep.subr.mxu0 0.0
      %747 = vmatpush1.msra.mxu0 0.0
      %748 = vmatprep.subr.mxu0 0.0
      %749 = vmatpush1.msra.mxu0 0.0
      %750 = vmatprep.mubr.f32.mxu0 0.0
      %751 = vmatmul.mubr.f32.gmra.mrb[0].mxu0 %v684
      %v752 = vpop.f32.mrb[0].mxu0
      %v753 = vadd.f32 %v352, %v752
      %v754 = vpop.f32.mrb[0].mxu0
      %755 = vdwg.mxu0
      %v756 = vxor.u32 %v753, 2147483648
      %v757 = vmul.f32 %v756, 1.442695
      %v758 = vpow.pop %v757
      %v759 = vadd.f32 %v758, 1.0
      %v760 = vrcp.pop %v759
      %v761 = vmul.f32 1.0, %v760
      %v762 = vtanh.pop %v753
      %v763 = vmul.f32 %v761, %v665
      %765 = vrot.lane.b32.xlu0 %v762, 64
      %v766 = vpop.permute.xlu0 %765
      %v768 = vmul.f32 %v761, %v766
      %770 = vrot.lane.b32.xlu0 %v768, 32
      %v771 = vpop.permute.xlu0 %770
      %v773 = vadd.f32 %v763, %v771
      %v774 = vtanh.pop %v773
      %776 = vrot.lane.b32.xlu0 %v774, 64
      %v777 = vpop.permute.xlu0 %776
      %v779 = vmul.f32 %v761, %v777
      %781 = vrot.lane.b32.xlu0 %v779, 32
      %v782 = vpop.permute.xlu0 %781
      %784 = vst.msk [vmem:[%s677] sm:$0xff] %vm346, %v782
      %s785 = scalar_lea.vmem [#allocation2], 32
      %v786 = vld [vmem:[%s785] sm:$0xff]
      %787 = vrot.lane.b32.xlu0 %v779, 64
      %v788 = vpop.permute.xlu0 %787
      %v790 = vsel %vm346, %v786, %v788
      %v792 = vsel %vm354, %v790, 0
      %794 = vmatprep.subr.mxu0 0.0
      %795 = vmatpush1.msra.mxu0 %v330
      %796 = vmatprep.subr.mxu0 0.0
      %797 = vmatpush1.msra.mxu0 %v331
      %798 = vmatprep.subr.mxu0 0.0
      %799 = vmatpush1.msra.mxu0 %v332
      %800 = vmatprep.subr.mxu0 0.0
      %801 = vmatpush1.msra.mxu0 %v333
      %802 = vmatprep.subr.mxu0 0.0
      %803 = vmatpush1.msra.mxu0 %v334
      %804 = vmatprep.subr.mxu0 0.0
      %805 = vmatpush1.msra.mxu0 %v335
      %806 = vmatprep.subr.mxu0 0.0
      %807 = vmatpush1.msra.mxu0 %v336
      %808 = vmatprep.subr.mxu0 0.0
      %809 = vmatpush1.msra.mxu0 %v337
      %810 = vmatprep.subr.mxu0 0.0
      %811 = vmatpush1.msra.mxu0 0.0
      %812 = vmatprep.subr.mxu0 0.0
      %813 = vmatpush1.msra.mxu0 0.0
      %814 = vmatprep.subr.mxu0 0.0
      %815 = vmatpush1.msra.mxu0 0.0
      %816 = vmatprep.subr.mxu0 0.0
      %817 = vmatpush1.msra.mxu0 0.0
      %818 = vmatprep.subr.mxu0 0.0
      %819 = vmatpush1.msra.mxu0 0.0
      %820 = vmatprep.subr.mxu0 0.0
      %821 = vmatpush1.msra.mxu0 0.0
      %822 = vmatprep.subr.mxu0 0.0
      %823 = vmatpush1.msra.mxu0 0.0
      %824 = vmatprep.subr.mxu0 0.0
      %825 = vmatpush1.msra.mxu0 0.0
      %826 = vmatprep.subr.mxu0 0.0
      %827 = vmatpush1.msra.mxu0 0.0
      %828 = vmatprep.subr.mxu0 0.0
      %829 = vmatpush1.msra.mxu0 0.0
      %830 = vmatprep.subr.mxu0 0.0
      %831 = vmatpush1.msra.mxu0 0.0
      %832 = vmatprep.subr.mxu0 0.0
      %833 = vmatpush1.msra.mxu0 0.0
      %834 = vmatprep.subr.mxu0 0.0
      %835 = vmatpush1.msra.mxu0 0.0
      %836 = vmatprep.subr.mxu0 0.0
      %837 = vmatpush1.msra.mxu0 0.0
      %838 = vmatprep.subr.mxu0 0.0
      %839 = vmatpush1.msra.mxu0 0.0
      %840 = vmatprep.subr.mxu0 0.0
      %841 = vmatpush1.msra.mxu0 0.0
      %842 = vmatprep.subr.mxu0 0.0
      %843 = vmatpush1.msra.mxu0 0.0
      %844 = vmatprep.subr.mxu0 0.0
      %845 = vmatpush1.msra.mxu0 0.0
      %846 = vmatprep.subr.mxu0 0.0
      %847 = vmatpush1.msra.mxu0 0.0
      %848 = vmatprep.subr.mxu0 0.0
      %849 = vmatpush1.msra.mxu0 0.0
      %850 = vmatprep.subr.mxu0 0.0
      %851 = vmatpush1.msra.mxu0 0.0
      %852 = vmatprep.subr.mxu0 0.0
      %853 = vmatpush1.msra.mxu0 0.0
      %854 = vmatprep.subr.mxu0 0.0
      %855 = vmatpush1.msra.mxu0 0.0
      %856 = vmatprep.subr.mxu0 0.0
      %857 = vmatpush1.msra.mxu0 0.0
      %858 = vmatprep.mubr.f32.mxu0 0.0
      %859 = vmatmul.mubr.f32.gmra.mrb[0].mxu0 %v792
      %v860 = vpop.f32.mrb[0].mxu0
      %v861 = vadd.f32 %v352, %v860
      %v862 = vpop.f32.mrb[0].mxu0
      %863 = vdwg.mxu0
      %v864 = vxor.u32 %v861, 2147483648
      %v865 = vmul.f32 %v864, 1.442695
      %v866 = vpow.pop %v865
      %v867 = vadd.f32 %v866, 1.0
      %v868 = vrcp.pop %v867
      %v869 = vmul.f32 1.0, %v868
      %v870 = vtanh.pop %v861
      %v871 = vmul.f32 %v869, %v773
      %873 = vrot.lane.b32.xlu0 %v870, 64
      %v874 = vpop.permute.xlu0 %873
      %v876 = vmul.f32 %v869, %v874
      %878 = vrot.lane.b32.xlu0 %v876, 32
      %v879 = vpop.permute.xlu0 %878
      %v881 = vadd.f32 %v871, %v879
      %v882 = vtanh.pop %v881
      %884 = vrot.lane.b32.xlu0 %v882, 64
      %v885 = vpop.permute.xlu0 %884
      %v887 = vmul.f32 %v869, %v885
      %889 = vrot.lane.b32.xlu0 %v887, 32
      %v890 = vpop.permute.xlu0 %889
      %892 = vst.msk [vmem:[%s785] sm:$0xff] %vm346, %v890
      %s893 = scalar_lea.vmem [#allocation2], 40
      %v894 = vld [vmem:[%s893] sm:$0xff]
      %895 = vrot.lane.b32.xlu0 %v887, 64
      %v896 = vpop.permute.xlu0 %895
      %v898 = vsel %vm346, %v894, %v896
      %v900 = vsel %vm354, %v898, 0
      %902 = vmatprep.subr.mxu0 0.0
      %903 = vmatpush1.msra.mxu0 %v330
      %904 = vmatprep.subr.mxu0 0.0
      %905 = vmatpush1.msra.mxu0 %v331
      %906 = vmatprep.subr.mxu0 0.0
      %907 = vmatpush1.msra.mxu0 %v332
      %908 = vmatprep.subr.mxu0 0.0
      %909 = vmatpush1.msra.mxu0 %v333
      %910 = vmatprep.subr.mxu0 0.0
      %911 = vmatpush1.msra.mxu0 %v334
      %912 = vmatprep.subr.mxu0 0.0
      %913 = vmatpush1.msra.mxu0 %v335
      %914 = vmatprep.subr.mxu0 0.0
      %915 = vmatpush1.msra.mxu0 %v336
      %916 = vmatprep.subr.mxu0 0.0
      %917 = vmatpush1.msra.mxu0 %v337
      %918 = vmatprep.subr.mxu0 0.0
      %919 = vmatpush1.msra.mxu0 0.0
      %920 = vmatprep.subr.mxu0 0.0
      %921 = vmatpush1.msra.mxu0 0.0
      %922 = vmatprep.subr.mxu0 0.0
      %923 = vmatpush1.msra.mxu0 0.0
      %924 = vmatprep.subr.mxu0 0.0
      %925 = vmatpush1.msra.mxu0 0.0
      %926 = vmatprep.subr.mxu0 0.0
      %927 = vmatpush1.msra.mxu0 0.0
      %928 = vmatprep.subr.mxu0 0.0
      %929 = vmatpush1.msra.mxu0 0.0
      %930 = vmatprep.subr.mxu0 0.0
      %931 = vmatpush1.msra.mxu0 0.0
      %932 = vmatprep.subr.mxu0 0.0
      %933 = vmatpush1.msra.mxu0 0.0
      %934 = vmatprep.subr.mxu0 0.0
      %935 = vmatpush1.msra.mxu0 0.0
      %936 = vmatprep.subr.mxu0 0.0
      %937 = vmatpush1.msra.mxu0 0.0
      %938 = vmatprep.subr.mxu0 0.0
      %939 = vmatpush1.msra.mxu0 0.0
      %940 = vmatprep.subr.mxu0 0.0
      %941 = vmatpush1.msra.mxu0 0.0
      %942 = vmatprep.subr.mxu0 0.0
      %943 = vmatpush1.msra.mxu0 0.0
      %944 = vmatprep.subr.mxu0 0.0
      %945 = vmatpush1.msra.mxu0 0.0
      %946 = vmatprep.subr.mxu0 0.0
      %947 = vmatpush1.msra.mxu0 0.0
      %948 = vmatprep.subr.mxu0 0.0
      %949 = vmatpush1.msra.mxu0 0.0
      %950 = vmatprep.subr.mxu0 0.0
      %951 = vmatpush1.msra.mxu0 0.0
      %952 = vmatprep.subr.mxu0 0.0
      %953 = vmatpush1.msra.mxu0 0.0
      %954 = vmatprep.subr.mxu0 0.0
      %955 = vmatpush1.msra.mxu0 0.0
      %956 = vmatprep.subr.mxu0 0.0
      %957 = vmatpush1.msra.mxu0 0.0
      %958 = vmatprep.subr.mxu0 0.0
      %959 = vmatpush1.msra.mxu0 0.0
      %960 = vmatprep.subr.mxu0 0.0
      %961 = vmatpush1.msra.mxu0 0.0
      %962 = vmatprep.subr.mxu0 0.0
      %963 = vmatpush1.msra.mxu0 0.0
      %964 = vmatprep.subr.mxu0 0.0
      %965 = vmatpush1.msra.mxu0 0.0
      %966 = vmatprep.mubr.f32.mxu0 0.0
      %967 = vmatmul.mubr.f32.gmra.mrb[0].mxu0 %v900
      %v968 = vpop.f32.mrb[0].mxu0
      %v969 = vadd.f32 %v352, %v968
      %v970 = vpop.f32.mrb[0].mxu0
      %971 = vdwg.mxu0
      %v972 = vxor.u32 %v969, 2147483648
      %v973 = vmul.f32 %v972, 1.442695
      %v974 = vpow.pop %v973
      %v975 = vadd.f32 %v974, 1.0
      %v976 = vrcp.pop %v975
      %v977 = vmul.f32 1.0, %v976
      %v978 = vtanh.pop %v969
      %v979 = vmul.f32 %v977, %v881
      %981 = vrot.lane.b32.xlu0 %v978, 64
      %v982 = vpop.permute.xlu0 %981
      %v984 = vmul.f32 %v977, %v982
      %986 = vrot.lane.b32.xlu0 %v984, 32
      %v987 = vpop.permute.xlu0 %986
      %v989 = vadd.f32 %v979, %v987
      %v990 = vtanh.pop %v989
      %992 = vrot.lane.b32.xlu0 %v990, 64
      %v993 = vpop.permute.xlu0 %992
      %v995 = vmul.f32 %v977, %v993
      %997 = vrot.lane.b32.xlu0 %v995, 32
      %v998 = vpop.permute.xlu0 %997
      %1000 = vst.msk [vmem:[%s893] sm:$0xff] %vm346, %v998
      %s1001 = scalar_lea.vmem [#allocation2], 48
      %v1002 = vld [vmem:[%s1001] sm:$0xff]
      %1003 = vrot.lane.b32.xlu0 %v995, 64
      %v1004 = vpop.permute.xlu0 %1003
      %v1006 = vsel %vm346, %v1002, %v1004
      %v1008 = vsel %vm354, %v1006, 0
      %1010 = vmatprep.subr.mxu0 0.0
      %1011 = vmatpush1.msra.mxu0 %v330
      %1012 = vmatprep.subr.mxu0 0.0
      %1013 = vmatpush1.msra.mxu0 %v331
      %1014 = vmatprep.subr.mxu0 0.0
      %1015 = vmatpush1.msra.mxu0 %v332
      %1016 = vmatprep.subr.mxu0 0.0
      %1017 = vmatpush1.msra.mxu0 %v333
      %1018 = vmatprep.subr.mxu0 0.0
      %1019 = vmatpush1.msra.mxu0 %v334
      %1020 = vmatprep.subr.mxu0 0.0
      %1021 = vmatpush1.msra.mxu0 %v335
      %1022 = vmatprep.subr.mxu0 0.0
      %1023 = vmatpush1.msra.mxu0 %v336
      %1024 = vmatprep.subr.mxu0 0.0
      %1025 = vmatpush1.msra.mxu0 %v337
      %1026 = vmatprep.subr.mxu0 0.0
      %1027 = vmatpush1.msra.mxu0 0.0
      %1028 = vmatprep.subr.mxu0 0.0
      %1029 = vmatpush1.msra.mxu0 0.0
      %1030 = vmatprep.subr.mxu0 0.0
      %1031 = vmatpush1.msra.mxu0 0.0
      %1032 = vmatprep.subr.mxu0 0.0
      %1033 = vmatpush1.msra.mxu0 0.0
      %1034 = vmatprep.subr.mxu0 0.0
      %1035 = vmatpush1.msra.mxu0 0.0
      %1036 = vmatprep.subr.mxu0 0.0
      %1037 = vmatpush1.msra.mxu0 0.0
      %1038 = vmatprep.subr.mxu0 0.0
      %1039 = vmatpush1.msra.mxu0 0.0
      %1040 = vmatprep.subr.mxu0 0.0
      %1041 = vmatpush1.msra.mxu0 0.0
      %1042 = vmatprep.subr.mxu0 0.0
      %1043 = vmatpush1.msra.mxu0 0.0
      %1044 = vmatprep.subr.mxu0 0.0
      %1045 = vmatpush1.msra.mxu0 0.0
      %1046 = vmatprep.subr.mxu0 0.0
      %1047 = vmatpush1.msra.mxu0 0.0
      %1048 = vmatprep.subr.mxu0 0.0
      %1049 = vmatpush1.msra.mxu0 0.0
      %1050 = vmatprep.subr.mxu0 0.0
      %1051 = vmatpush1.msra.mxu0 0.0
      %1052 = vmatprep.subr.mxu0 0.0
      %1053 = vmatpush1.msra.mxu0 0.0
      %1054 = vmatprep.subr.mxu0 0.0
      %1055 = vmatpush1.msra.mxu0 0.0
      %1056 = vmatprep.subr.mxu0 0.0
      %1057 = vmatpush1.msra.mxu0 0.0
      %1058 = vmatprep.subr.mxu0 0.0
      %1059 = vmatpush1.msra.mxu0 0.0
      %1060 = vmatprep.subr.mxu0 0.0
      %1061 = vmatpush1.msra.mxu0 0.0
      %1062 = vmatprep.subr.mxu0 0.0
      %1063 = vmatpush1.msra.mxu0 0.0
      %1064 = vmatprep.subr.mxu0 0.0
      %1065 = vmatpush1.msra.mxu0 0.0
      %1066 = vmatprep.subr.mxu0 0.0
      %1067 = vmatpush1.msra.mxu0 0.0
      %1068 = vmatprep.subr.mxu0 0.0
      %1069 = vmatpush1.msra.mxu0 0.0
      %1070 = vmatprep.subr.mxu0 0.0
      %1071 = vmatpush1.msra.mxu0 0.0
      %1072 = vmatprep.subr.mxu0 0.0
      %1073 = vmatpush1.msra.mxu0 0.0
      %1074 = vmatprep.mubr.f32.mxu0 0.0
      %1075 = vmatmul.mubr.f32.gmra.mrb[0].mxu0 %v1008
      %v1076 = vpop.f32.mrb[0].mxu0
      %v1077 = vadd.f32 %v352, %v1076
      %v1078 = vpop.f32.mrb[0].mxu0
      %1079 = vdwg.mxu0
      %v1080 = vxor.u32 %v1077, 2147483648
      %v1081 = vmul.f32 %v1080, 1.442695
      %v1082 = vpow.pop %v1081
      %v1083 = vadd.f32 %v1082, 1.0
      %v1084 = vrcp.pop %v1083
      %v1085 = vmul.f32 1.0, %v1084
      %v1086 = vtanh.pop %v1077
      %v1087 = vmul.f32 %v1085, %v989
      %1089 = vrot.lane.b32.xlu0 %v1086, 64
      %v1090 = vpop.permute.xlu0 %1089
      %v1092 = vmul.f32 %v1085, %v1090
      %1094 = vrot.lane.b32.xlu0 %v1092, 32
      %v1095 = vpop.permute.xlu0 %1094
      %v1097 = vadd.f32 %v1087, %v1095
      %v1098 = vtanh.pop %v1097
      %1100 = vrot.lane.b32.xlu0 %v1098, 64
      %v1101 = vpop.permute.xlu0 %1100
      %v1103 = vmul.f32 %v1085, %v1101
      %1105 = vrot.lane.b32.xlu0 %v1103, 32
      %v1106 = vpop.permute.xlu0 %1105
      %1108 = vst.msk [vmem:[%s1001] sm:$0xff] %vm346, %v1106
      %s1109 = scalar_lea.vmem [#allocation2], 56
      %v1110 = vld [vmem:[%s1109] sm:$0xff]
      %1111 = vrot.lane.b32.xlu0 %v1103, 64
      %v1112 = vpop.permute.xlu0 %1111
      %v1114 = vsel %vm346, %v1110, %v1112
      %v1116 = vsel %vm354, %v1114, 0
      %1118 = vmatprep.subr.mxu0 0.0
      %1119 = vmatpush1.msra.mxu0 %v330
      %1120 = vmatprep.subr.mxu0 0.0
      %1121 = vmatpush1.msra.mxu0 %v331
      %1122 = vmatprep.subr.mxu0 0.0
      %1123 = vmatpush1.msra.mxu0 %v332
      %1124 = vmatprep.subr.mxu0 0.0
      %1125 = vmatpush1.msra.mxu0 %v333
      %1126 = vmatprep.subr.mxu0 0.0
      %1127 = vmatpush1.msra.mxu0 %v334
      %1128 = vmatprep.subr.mxu0 0.0
      %1129 = vmatpush1.msra.mxu0 %v335
      %1130 = vmatprep.subr.mxu0 0.0
      %1131 = vmatpush1.msra.mxu0 %v336
      %1132 = vmatprep.subr.mxu0 0.0
      %1133 = vmatpush1.msra.mxu0 %v337
      %1134 = vmatprep.subr.mxu0 0.0
      %1135 = vmatpush1.msra.mxu0 0.0
      %1136 = vmatprep.subr.mxu0 0.0
      %1137 = vmatpush1.msra.mxu0 0.0
      %1138 = vmatprep.subr.mxu0 0.0
      %1139 = vmatpush1.msra.mxu0 0.0
      %1140 = vmatprep.subr.mxu0 0.0
      %1141 = vmatpush1.msra.mxu0 0.0
      %1142 = vmatprep.subr.mxu0 0.0
      %1143 = vmatpush1.msra.mxu0 0.0
      %1144 = vmatprep.subr.mxu0 0.0
      %1145 = vmatpush1.msra.mxu0 0.0
      %1146 = vmatprep.subr.mxu0 0.0
      %1147 = vmatpush1.msra.mxu0 0.0
      %1148 = vmatprep.subr.mxu0 0.0
      %1149 = vmatpush1.msra.mxu0 0.0
      %1150 = vmatprep.subr.mxu0 0.0
      %1151 = vmatpush1.msra.mxu0 0.0
      %1152 = vmatprep.subr.mxu0 0.0
      %1153 = vmatpush1.msra.mxu0 0.0
      %1154 = vmatprep.subr.mxu0 0.0
      %1155 = vmatpush1.msra.mxu0 0.0
      %1156 = vmatprep.subr.mxu0 0.0
      %1157 = vmatpush1.msra.mxu0 0.0
      %1158 = vmatprep.subr.mxu0 0.0
      %1159 = vmatpush1.msra.mxu0 0.0
      %1160 = vmatprep.subr.mxu0 0.0
      %1161 = vmatpush1.msra.mxu0 0.0
      %1162 = vmatprep.subr.mxu0 0.0
      %1163 = vmatpush1.msra.mxu0 0.0
      %1164 = vmatprep.subr.mxu0 0.0
      %1165 = vmatpush1.msra.mxu0 0.0
      %1166 = vmatprep.subr.mxu0 0.0
      %1167 = vmatpush1.msra.mxu0 0.0
      %1168 = vmatprep.subr.mxu0 0.0
      %1169 = vmatpush1.msra.mxu0 0.0
      %1170 = vmatprep.subr.mxu0 0.0
      %1171 = vmatpush1.msra.mxu0 0.0
      %1172 = vmatprep.subr.mxu0 0.0
      %1173 = vmatpush1.msra.mxu0 0.0
      %1174 = vmatprep.subr.mxu0 0.0
      %1175 = vmatpush1.msra.mxu0 0.0
      %1176 = vmatprep.subr.mxu0 0.0
      %1177 = vmatpush1.msra.mxu0 0.0
      %1178 = vmatprep.subr.mxu0 0.0
      %1179 = vmatpush1.msra.mxu0 0.0
      %1180 = vmatprep.subr.mxu0 0.0
      %1181 = vmatpush1.msra.mxu0 0.0
      %1182 = vmatprep.mubr.f32.mxu0 0.0
      %1183 = vmatmul.mubr.f32.gmra.mrb[0].mxu0 %v1116
      %v1184 = vpop.f32.mrb[0].mxu0
      %v1185 = vadd.f32 %v352, %v1184
      %v1186 = vpop.f32.mrb[0].mxu0
      %1187 = vdwg.mxu0
      %v1188 = vxor.u32 %v1185, 2147483648
      %v1189 = vmul.f32 %v1188, 1.442695
      %v1190 = vpow.pop %v1189
      %v1191 = vadd.f32 %v1190, 1.0
      %v1192 = vrcp.pop %v1191
      %v1193 = vmul.f32 1.0, %v1192
      %v1194 = vtanh.pop %v1185
      %v1195 = vmul.f32 %v1193, %v1097
      %1197 = vrot.lane.b32.xlu0 %v1194, 64
      %v1198 = vpop.permute.xlu0 %1197
      %v1200 = vmul.f32 %v1193, %v1198
      %1202 = vrot.lane.b32.xlu0 %v1200, 32
      %v1203 = vpop.permute.xlu0 %1202
      %v1205 = vadd.f32 %v1195, %v1203
      %v1206 = vtanh.pop %v1205
      %1208 = vrot.lane.b32.xlu0 %v1206, 64
      %v1209 = vpop.permute.xlu0 %1208
      %v1211 = vmul.f32 %v1193, %v1209
      %1213 = vrot.lane.b32.xlu0 %v1211, 32
      %v1214 = vpop.permute.xlu0 %1213
      %1216 = vst.msk [vmem:[%s1109] sm:$0xff] %vm346, %v1214
      %1217 = vst.msk [vmem:[%s304] sm:$0xff] %vm346, %v1214
      %1219 = vrot.lane.b32.xlu0 %v1205, 96
      %v1220 = vpop.permute.xlu0 %1219
      %1222 = vst.msk [vmem:[%s308] sm:$0xff] %vm346, %v1220
      %p1223 = scmp.lt.s32.totalorder %s18, 1
      %s1224 = scalar_select %p1223, %s18, 1
      %s1225 = smul.addr %s1224, 8
      %s1226 = scalar_lea.vmem %s5, %s1225
      %p1227 = scmp.lt.s32.totalorder %s18, 1
      %s1228 = scalar_select %p1227, %s18, 1
      %s1229 = smul.addr %s1228, 8
      %s1230 = scalar_lea.vmem %s6, %s1229
      // Predicated region
      $region45: #{seq2seq_encoder_forward.1} parent=39 // pred_check
        %p1231 = pneg %p161
      $region46: #{seq2seq_encoder_forward.1} parent=39 // pred_check_branch
        %1233 = sbr.rel (%p1231) target = $region48
      $region47: #{seq2seq_encoder_forward.1} parent=39 // pred_region
        _
      $region48: #{seq2seq_encoder_forward.1} parent=39 // pred_fallthru
        _
      // Predicated region
      $region49: #{seq2seq_encoder_forward.1} parent=39 // pred_check
        %p1234 = pneg %p187
      $region50: #{seq2seq_encoder_forward.1} parent=39 // pred_check_branch
        %1236 = sbr.rel (%p1234) target = $region52
      $region51: #{seq2seq_encoder_forward.1} parent=39 // pred_region
        _
      $region52: #{seq2seq_encoder_forward.1} parent=39 // pred_fallthru
        _
    $region40: #{seq2seq_encoder_forward.1} parent=5 // pred_fallthru
      _
    %p1237 = scmp.le.s32.totalorder 2, %s13
    // Predicated region
    $region53: #{seq2seq_encoder_forward.1} parent=5 // pred_check
      %p1238 = pneg %p1237
    $region54: #{seq2seq_encoder_forward.1} parent=5 // pred_check_branch
      %1240 = sbr.rel (%p1238) target = $region56
    $region55: #{seq2seq_encoder_forward.1} parent=5 // pred_region
      %s1241 = ssub.s32 %s13, 2
      // Predicated region
      $region57: #{seq2seq_encoder_forward.1} parent=55 // pred_check
        %p1242 = pneg %p167
      $region58: #{seq2seq_encoder_forward.1} parent=55 // pred_check_branch
        %1244 = sbr.rel (%p1242) target = $region60
      $region59: #{seq2seq_encoder_forward.1} parent=55 // pred_region
        %p1245 = scmp.lt.s32.totalorder %s19, 1
        %s1246 = scalar_select %p1245, %s19, 1
        %s1247 = smul.addr %s1246, 8
        %s1248 = scalar_lea.vmem %s5, %s1247
      $region60: #{seq2seq_encoder_forward.1} parent=55 // pred_fallthru
        _
      // Predicated region
      $region61: #{seq2seq_encoder_forward.1} parent=55 // pred_check
        %p1249 = pneg %p193
      $region62: #{seq2seq_encoder_forward.1} parent=55 // pred_check_branch
        %1251 = sbr.rel (%p1249) target = $region64
      $region63: #{seq2seq_encoder_forward.1} parent=55 // pred_region
        %p1252 = scmp.lt.s32.totalorder %s19, 1
        %s1253 = scalar_select %p1252, %s19, 1
        %s1254 = smul.addr %s1253, 8
        %s1255 = scalar_lea.vmem %s6, %s1254
      $region64: #{seq2seq_encoder_forward.1} parent=55 // pred_fallthru
        _
    $region56: #{seq2seq_encoder_forward.1} parent=5 // pred_fallthru
      _
  $region6: #{seq2seq_encoder_forward.1} parent=0 // loop_footer
    %s17 = sadd.s32 1, %s13
  $region7: #{seq2seq_encoder_forward.1} parent=0 // loop_footer_branch
    %12 = sbr.rel target = $region3
  $region8: #{seq2seq_encoder_forward.1} parent=0 // loop_exit
    _

</llo_original>
